<compile_context>
chip_gen: v7x
topology: tpu7x:2x2x1
jax: 0.10.0
libtpu: 0.0.40
codegen_flags: <defaults>
</compile_context>

<pallas_src>
import numpy as np
import jax
import jax.numpy as jnp
from jax.experimental import pallas as pl
from jax.experimental.pallas import tpu as pltpu


# --------------------------------------------------------------------------
# Host-side construction of dense bilinear-resize matrices (built once, cached)
# --------------------------------------------------------------------------
def _round_up(x, m):
    return ((x + m - 1) // m) * m


def _bilinear_weights_1d(out_size, in_size):
    """1-D interpolation matrix matching F.interpolate(mode='bilinear',
    align_corners=False): src = (dst + 0.5) * in/out - 0.5, clamped at 0."""
    scale = in_size / out_size
    dst = np.arange(out_size, dtype=np.float64)
    src = np.maximum((dst + 0.5) * scale - 0.5, 0.0)
    x0 = np.minimum(np.floor(src).astype(np.int64), in_size - 1)
    x1 = np.minimum(x0 + 1, in_size - 1)
    l1 = (src - x0).astype(np.float32)
    l0 = 1.0 - l1
    w = np.zeros((out_size, in_size), dtype=np.float32)
    w[np.arange(out_size), x0] += l0
    w[np.arange(out_size), x1] += l1
    return w


def _resize_matrix(in_hw, out_hw):
    """(Ho*Wo, Hi*Wi) matrix R so that out_flat = R @ in_flat is the separable
    bilinear resize (align_corners=False) of the row-major-flattened image."""
    wh = _bilinear_weights_1d(out_hw[0], in_hw[0])
    ww = _bilinear_weights_1d(out_hw[1], in_hw[1])
    return np.kron(wh, ww).astype(np.float32)


# --------------------------------------------------------------------------
# The fused kernel: field -> bf16 resize matmul -> 3 pooling matmuls, in VMEM
# --------------------------------------------------------------------------
def _make_kernel(c_sizes):
    c0, c1, c2, c3, c4 = c_sizes

    def kernel(isoval_ref, ninvvar_ref, dist_ref, mask_ref,
               ra_ref, a0_ref, a1_ref, a2_ref, out_ref):
        """Shapes (batch squeezed):
          isoval_ref / ninvvar_ref : (K+1, 1) f32   row K has -1/var == 0 so
                                                    field's last row == mask
          dist_ref / mask_ref      : (1, HW)  f32
          ra_ref                   : (HW, w0+w1+w2) bf16, per-level column
                                     blocks zero-padded to 128-lane multiples
          a0_ref / a1_ref          : (C0, w0) / (C1, w1) f32, channel-major
          a2_ref                   : (C2+C3+C4+2, w2) f32: [act2; act3@R3;
                                     act4@R4; colsum(R3); colsum(R4)]
          out_ref                  : (K+1, C0+..+C4) f32; rows 0..K-1 feature
                                     rows, row K = mask features
        """
        # isoline field (f32 elementwise; exp on EUP)
        dist = dist_ref[...]
        msk = mask_ref[...]
        d = isoval_ref[...] - dist                                  # (K+1, HW)
        field = msk * jnp.exp((d * d) * ninvvar_ref[...])           # f32

        # one bf16 MXU matmul resizes every row (K isolines + mask) to lvl 0,1,2
        res = jnp.dot(field.astype(jnp.bfloat16), ra_ref[...],
                      preferred_element_type=jnp.float32)           # (K+1, P)

        w0 = a0_ref.shape[1]
        w1 = a1_ref.shape[1]
        w2 = a2_ref.shape[1]
        # 128-lane aligned, zero-padded slices (free re-views)
        lhs0 = res[:, :w0]
        lhs1 = res[:, w0:w0 + w1]
        lhs2 = res[:, w0 + w1:w0 + w1 + w2]

        def pool(lhs, rhs):
            # contract the lane (hw) dim of both operands -> (K+1, rows(rhs))
            return jnp.einsum('kx,cx->kc', lhs, rhs,
                              preferred_element_type=jnp.float32)

        p0 = pool(lhs0, a0_ref[...])          # (K+1, C0)
        p1 = pool(lhs1, a1_ref[...])          # (K+1, C1)
        p2 = pool(lhs2, a2_ref[...])          # (K+1, C2+C3+C4+2)  lvls 3/4 folded

        # denominators: XLU lane-sum for levels 0..2 (padded lanes are exact 0);
        # levels 3/4 are the last two columns of p2 (column sums of R3/R4).
        den0 = jnp.sum(lhs0, axis=-1, keepdims=True)
        den1 = jnp.sum(lhs1, axis=-1, keepdims=True)
        den2 = jnp.sum(lhs2, axis=-1, keepdims=True)
        den3 = p2[:, c2 + c3 + c4:c2 + c3 + c4 + 1]
        den4 = p2[:, c2 + c3 + c4 + 1:c2 + c3 + c4 + 2]

        # Faithful to the reference: no eps clamp (zero-mass regions -> NaN/Inf)
        out_ref[:, 0:c0] = p0 * pl.reciprocal(den0, approx=True)
        out_ref[:, c0:c0 + c1] = p1 * pl.reciprocal(den1, approx=True)
        out_ref[:, c0 + c1:c0 + c1 + c2] = (
            p2[:, :c2] * pl.reciprocal(den2, approx=True))
        out_ref[:, c0 + c1 + c2:c0 + c1 + c2 + c3] = (
            p2[:, c2:c2 + c3] * pl.reciprocal(den3, approx=True))
        out_ref[:, c0 + c1 + c2 + c3:c0 + c1 + c2 + c3 + c4] = (
            p2[:, c2 + c3:c2 + c3 + c4] * pl.reciprocal(den4, approx=True))

    return kernel


# --------------------------------------------------------------------------
# Jitted forward wrapper: light layout prep around ONE pallas_call
# --------------------------------------------------------------------------
@jax.jit
def _isoline_forward(isovals, ninvvar, distance, mask, ra_t, r3, r4, den34,
                     act0, act1, act2, act3, act4):
    kp1 = isovals.shape[0]
    h, w = distance.shape[2], distance.shape[3]
    hw = h * w
    dist = distance.reshape(1, hw).astype(jnp.float32)
    msk = mask.reshape(1, hw).astype(jnp.float32)

    acts = (act0, act1, act2, act3, act4)
    c = [a.shape[1] for a in acts]
    s = [a.shape[2] * a.shape[3] for a in acts]
    w0, w1, w2 = _round_up(s[0], 128), _round_up(s[1], 128), _round_up(s[2], 128)

    def flat(a):                       # channel-major, lane-dense (C, hw)
        return a.reshape(a.shape[1], -1).astype(jnp.float32)

    def pad_lanes(x, width):
        if x.shape[1] == width:
            return x
        return jnp.pad(x, ((0, 0), (0, width - x.shape[1])))

    a0 = pad_lanes(flat(act0), w0)                         # (C0, w0)
    a1 = pad_lanes(flat(act1), w1)                         # (C1, w1)
    # fold level-3/4 resize into the level-2 pooling slab (XLA-side GEMMs)
    a3f = flat(act3) @ r3                                  # (C3, hw2)
    a4f = flat(act4) @ r4                                  # (C4, hw2)
    a2e = pad_lanes(jnp.concatenate([flat(act2), a3f, a4f, den34], axis=0), w2)

    total_c = int(sum(c))
    flops = 2 * kp1 * (hw * (w0 + w1 + w2)
                       + w0 * c[0] + w1 * c[1] + w2 * (c[2] + c[3] + c[4] + 2))
    bytes_accessed = (ra_t.size * 2
                      + 4 * (a0.size + a1.size + a2e.size + dist.size + msk.size
                             + isovals.size + ninvvar.size + kp1 * total_c))

    out = pl.pallas_call(
        _make_kernel(tuple(c)),
        out_shape=jax.ShapeDtypeStruct((kp1, total_c), jnp.float32),
        # grid-less: every operand is a single whole-array VMEM block
        # (total footprint ~1.2 MiB), no pipeline prologue to pay.
        compiler_params=pltpu.CompilerParams(vmem_limit_bytes=16 * 1024 * 1024),
        cost_estimate=pl.CostEstimate(flops=flops, transcendentals=kp1 * hw,
                                      bytes_accessed=bytes_accessed),
    )(isovals, ninvvar, dist, msk, ra_t, a0, a1, a2e)

    feats, fmasks = [], []
    col = 0
    for ci in c:
        feats.append(out[:kp1 - 1, col:col + ci])   # (K, C_i)
        fmasks.append(out[kp1 - 1, col:col + ci])   # (C_i,)
        col += ci
    return tuple(feats), tuple(fmasks)


class IsolineToFeatures:
    """JAX/Pallas port of Isoline_to_features (single fused TPU kernel)."""

    def __init__(self, shapes, isolines, variances):
        self.shapes = shapes
        iso = np.asarray(isolines, dtype=np.float32).reshape(-1)
        var = np.asarray(variances, dtype=np.float32).reshape(-1)
        k = iso.shape[0]
        self.K = k
        # Extra "mask" row: -1/var == 0 makes exp(...) == 1 so the field
        # kernel emits the raw mask as its last row.
        self._isovals = jnp.asarray(
            np.concatenate([iso, np.zeros((1,), np.float32)]).reshape(k + 1, 1))
        self._ninvvar = jnp.asarray(
            np.concatenate([(-1.0 / var).astype(np.float32),
                            np.zeros((1,), np.float32)]).reshape(k + 1, 1))

        self._lvl = [(shapes[str(i)][2], shapes[str(i)][3]) for i in range(5)]
        # Level-2 -> level-3/4 resize matrices, folded into pooling (f32 —
        # the reference resizes the *already resized* isolines2 to levels 3/4).
        r3 = _resize_matrix(self._lvl[2], self._lvl[3])        # (hw3, hw2)
        r4 = _resize_matrix(self._lvl[2], self._lvl[4])        # (hw4, hw2)
        self._r3 = jnp.asarray(r3)
        self._r4 = jnp.asarray(r4)
        # Folded denominators: column sums of R3 / R4.
        self._den34 = jnp.asarray(
            np.stack([r3.sum(axis=0), r4.sum(axis=0)]).astype(np.float32))
        self._ra_cache = {}   # keyed by the distance-map source (H, W)

    def _ra(self, src_hw):
        if src_hw not in self._ra_cache:
            blocks = []
            for lvl in range(3):
                rt = _resize_matrix(src_hw, self._lvl[lvl]).T   # (hw_src, hw_lvl)
                pad = _round_up(rt.shape[1], 128) - rt.shape[1]
                if pad:
                    rt = np.pad(rt, ((0, 0), (0, pad)))
                blocks.append(rt)
            ra = np.concatenate(blocks, axis=1)                 # (hw_src, w0+w1+w2)
            # bf16 weights: halves the dominant HBM read; MXU-native input.
            # (~1e-2 relative error budget on the resized fields is accepted.)
            self._ra_cache[src_hw] = jnp.asarray(ra).astype(jnp.bfloat16)
        return self._ra_cache[src_hw]

    def __call__(self, activations, distance, mask, compute_features_mask=True):
        h, w = distance.shape[2], distance.shape[3]
        if compute_features_mask:
            # Same implicit constraint as the reference: masks[2] is the
            # original-resolution mask broadcast against level-2 activations,
            # and the level-3/4 mask resizes route through level 2 here.
            assert self._lvl[2] == (h, w), \
                "shapes['2'] spatial must equal the distance/mask resolution"
        acts = tuple(activations[str(i)] for i in range(5))   # batch == 1
        feats, fmasks = _isoline_forward(self._isovals, self._ninvvar,
                                         distance, mask, self._ra((h, w)),
                                         self._r3, self._r4, self._den34, *acts)
        features = list(feats)
        features_mask = list(fmasks) if compute_features_mask else []
        return features, features_mask


# --------------------------------------------------------------------------
# Demo
# --------------------------------------------------------------------------
if __name__ == "__main__":
    key = jax.random.PRNGKey(0)
    K = 6          # number of isolines
    H = W = 16     # distance-map / mask resolution (== shapes['2'] spatial)
    C = 8          # feature channels per level

    shapes = {'0': (1, C, 32, 32),
              '1': (1, C, 24, 24),
              '2': (1, C, 16, 16),
              '3': (1, C, 12, 12),
              '4': (1, C, 8, 8)}

    isolines = jnp.linspace(0.0, 1.0, K).astype(jnp.float32)
    variances = jnp.full((K,), 0.05, dtype=jnp.float32)

    keys = jax.random.split(key, 7)
    activations = {str(i): jax.random.normal(keys[i], shapes[str(i)],
                                             dtype=jnp.float32)
                   for i in range(5)}
    distance = jax.random.uniform(keys[5], (1, 1, H, W), dtype=jnp.float32)
    mask = (jax.random.uniform(keys[6], (1, 1, H, W)) > 0.3).astype(jnp.float32)

    model = IsolineToFeatures(shapes, isolines, variances)
    features, features_mask = model(activations, distance, mask,
                                    compute_features_mask=True)

    jax.block_until_ready(features)
    jax.block_until_ready(features_mask)

    assert len(features) == 5 and len(features_mask) == 5
    for i in range(5):
        assert features[i].shape == (K, C)
        assert features_mask[i].shape == (C,)
    print("KERNEL_OK")
</pallas_src>

<mosaic_0001>
module attributes {stable_mosaic.version = 11 : i64} {
  func.func @kernel(%arg0: memref<7x1xf32, #tpu.memory_space<vmem>>, %arg1: memref<7x1xf32, #tpu.memory_space<vmem>>, %arg2: memref<1x256xf32, #tpu.memory_space<vmem>>, %arg3: memref<1x256xf32, #tpu.memory_space<vmem>>, %arg4: memref<256x1920xbf16, #tpu.memory_space<vmem>>, %arg5: memref<8x1024xf32, #tpu.memory_space<vmem>>, %arg6: memref<8x640xf32, #tpu.memory_space<vmem>>, %arg7: memref<26x256xf32, #tpu.memory_space<vmem>>, %arg8: memref<7x40xf32, #tpu.memory_space<vmem>>) attributes {dimension_semantics = [], scalar_prefetch = 0 : i64, scratch_operands = 0 : i64, tpu.core_type = #tpu.core_type<tc>} {
    %c0 = arith.constant 0 : index
    %c0_0 = arith.constant 0 : index
    %0 = vector.load %arg2[%c0, %c0_0] : memref<1x256xf32, #tpu.memory_space<vmem>>, vector<1x256xf32>
    %c0_1 = arith.constant 0 : index
    %c0_2 = arith.constant 0 : index
    %1 = vector.load %arg3[%c0_1, %c0_2] : memref<1x256xf32, #tpu.memory_space<vmem>>, vector<1x256xf32>
    %c0_3 = arith.constant 0 : index
    %c0_4 = arith.constant 0 : index
    %2 = vector.load %arg0[%c0_3, %c0_4] : memref<7x1xf32, #tpu.memory_space<vmem>>, vector<7x1xf32>
    %3 = vector.broadcast %2 : vector<7x1xf32> to vector<7x256xf32>
    %4 = vector.broadcast %0 : vector<1x256xf32> to vector<7x256xf32>
    %5 = arith.subf %3, %4 : vector<7x256xf32>
    %6 = arith.mulf %5, %5 : vector<7x256xf32>
    %c0_5 = arith.constant 0 : index
    %c0_6 = arith.constant 0 : index
    %7 = vector.load %arg1[%c0_5, %c0_6] : memref<7x1xf32, #tpu.memory_space<vmem>>, vector<7x1xf32>
    %8 = vector.broadcast %7 : vector<7x1xf32> to vector<7x256xf32>
    %9 = arith.mulf %6, %8 : vector<7x256xf32>
    %10 = math.exp %9 : vector<7x256xf32>
    %11 = vector.broadcast %1 : vector<1x256xf32> to vector<7x256xf32>
    %12 = arith.mulf %11, %10 : vector<7x256xf32>
    %13 = arith.truncf %12 : vector<7x256xf32> to vector<7x256xbf16>
    %c0_7 = arith.constant 0 : index
    %c0_8 = arith.constant 0 : index
    %14 = vector.load %arg4[%c0_7, %c0_8] : memref<256x1920xbf16, #tpu.memory_space<vmem>>, vector<256x1920xbf16>
    %cst = arith.constant dense<0.000000e+00> : vector<7x1920xf32>
    %15 = tpu.matmul %13, %14, %cst {dimension_numbers = #tpu.dot_dimension_numbers<[1], [0], [0], [1], [0, 0, 1, 1], [], []>} : vector<7x256xbf16>, vector<256x1920xbf16>, vector<7x1920xf32> -> vector<7x1920xf32>
    %16 = vector.extract_strided_slice %15 {offsets = [0, 0], sizes = [7, 1024], strides = [1, 1]} : vector<7x1920xf32> to vector<7x1024xf32>
    %17 = vector.extract_strided_slice %15 {offsets = [0, 1024], sizes = [7, 640], strides = [1, 1]} : vector<7x1920xf32> to vector<7x640xf32>
    %18 = vector.extract_strided_slice %15 {offsets = [0, 1664], sizes = [7, 256], strides = [1, 1]} : vector<7x1920xf32> to vector<7x256xf32>
    %c0_9 = arith.constant 0 : index
    %c0_10 = arith.constant 0 : index
    %19 = vector.load %arg5[%c0_9, %c0_10] : memref<8x1024xf32, #tpu.memory_space<vmem>>, vector<8x1024xf32>
    "tpu.trace_start"() <{level = 10 : i32, message = "kx,cx->kc"}> : () -> ()
    %cst_11 = arith.constant dense<0.000000e+00> : vector<7x8xf32>
    %20 = tpu.matmul %16, %19, %cst_11 {dimension_numbers = #tpu.dot_dimension_numbers<[1], [1], [0], [0], [0, 0, 1, 0], [], []>} : vector<7x1024xf32>, vector<8x1024xf32>, vector<7x8xf32> -> vector<7x8xf32>
    "tpu.trace_stop"() : () -> ()
    %c0_12 = arith.constant 0 : index
    %c0_13 = arith.constant 0 : index
    %21 = vector.load %arg6[%c0_12, %c0_13] : memref<8x640xf32, #tpu.memory_space<vmem>>, vector<8x640xf32>
    "tpu.trace_start"() <{level = 10 : i32, message = "kx,cx->kc"}> : () -> ()
    %cst_14 = arith.constant dense<0.000000e+00> : vector<7x8xf32>
    %22 = tpu.matmul %17, %21, %cst_14 {dimension_numbers = #tpu.dot_dimension_numbers<[1], [1], [0], [0], [0, 0, 1, 0], [], []>} : vector<7x640xf32>, vector<8x640xf32>, vector<7x8xf32> -> vector<7x8xf32>
    "tpu.trace_stop"() : () -> ()
    %c0_15 = arith.constant 0 : index
    %c0_16 = arith.constant 0 : index
    %23 = vector.load %arg7[%c0_15, %c0_16] : memref<26x256xf32, #tpu.memory_space<vmem>>, vector<26x256xf32>
    "tpu.trace_start"() <{level = 10 : i32, message = "kx,cx->kc"}> : () -> ()
    %cst_17 = arith.constant dense<0.000000e+00> : vector<7x26xf32>
    %24 = tpu.matmul %18, %23, %cst_17 {dimension_numbers = #tpu.dot_dimension_numbers<[1], [1], [0], [0], [0, 0, 1, 0], [], []>} : vector<7x256xf32>, vector<26x256xf32>, vector<7x26xf32> -> vector<7x26xf32>
    "tpu.trace_stop"() : () -> ()
    %cst_18 = arith.constant dense<0.000000e+00> : vector<7xf32>
    %25 = vector.multi_reduction <add>, %16, %cst_18 [1] : vector<7x1024xf32> to vector<7xf32>
    %26 = vector.shape_cast %25 : vector<7xf32> to vector<7x1xf32>
    %cst_19 = arith.constant dense<0.000000e+00> : vector<7xf32>
    %27 = vector.multi_reduction <add>, %17, %cst_19 [1] : vector<7x640xf32> to vector<7xf32>
    %28 = vector.shape_cast %27 : vector<7xf32> to vector<7x1xf32>
    %cst_20 = arith.constant dense<0.000000e+00> : vector<7xf32>
    %29 = vector.multi_reduction <add>, %18, %cst_20 [1] : vector<7x256xf32> to vector<7xf32>
    %30 = vector.shape_cast %29 : vector<7xf32> to vector<7x1xf32>
    %31 = vector.extract_strided_slice %24 {offsets = [0, 24], sizes = [7, 1], strides = [1, 1]} : vector<7x26xf32> to vector<7x1xf32>
    %32 = vector.extract_strided_slice %24 {offsets = [0, 25], sizes = [7, 1], strides = [1, 1]} : vector<7x26xf32> to vector<7x1xf32>
    %33 = tpu.reciprocal %26 {approx = true} : vector<7x1xf32> -> vector<7x1xf32>
    %34 = vector.broadcast %33 : vector<7x1xf32> to vector<7x8xf32>
    %35 = arith.mulf %20, %34 : vector<7x8xf32>
    %c0_21 = arith.constant 0 : index
    %c0_22 = arith.constant 0 : index
    %36 = vector.load %arg8[%c0_21, %c0_22] : memref<7x40xf32, #tpu.memory_space<vmem>>, vector<7x8xf32>
    tpu.vector_store %arg8[%c0_21, %c0_22], %35 {strides = array<i32>} : memref<7x40xf32, #tpu.memory_space<vmem>>, vector<7x8xf32>,
    %37 = tpu.reciprocal %28 {approx = true} : vector<7x1xf32> -> vector<7x1xf32>
    %38 = vector.broadcast %37 : vector<7x1xf32> to vector<7x8xf32>
    %39 = arith.mulf %22, %38 : vector<7x8xf32>
    %c0_23 = arith.constant 0 : index
    %c8 = arith.constant 8 : index
    %40 = vector.load %arg8[%c0_23, %c8] : memref<7x40xf32, #tpu.memory_space<vmem>>, vector<7x8xf32>
    tpu.vector_store %arg8[%c0_23, %c8], %39 {strides = array<i32>} : memref<7x40xf32, #tpu.memory_space<vmem>>, vector<7x8xf32>,
    %41 = vector.extract_strided_slice %24 {offsets = [0, 0], sizes = [7, 8], strides = [1, 1]} : vector<7x26xf32> to vector<7x8xf32>
    %42 = tpu.reciprocal %30 {approx = true} : vector<7x1xf32> -> vector<7x1xf32>
    %43 = vector.broadcast %42 : vector<7x1xf32> to vector<7x8xf32>
    %44 = arith.mulf %41, %43 : vector<7x8xf32>
    %c0_24 = arith.constant 0 : index
    %c16 = arith.constant 16 : index
    %45 = vector.load %arg8[%c0_24, %c16] : memref<7x40xf32, #tpu.memory_space<vmem>>, vector<7x8xf32>
    tpu.vector_store %arg8[%c0_24, %c16], %44 {strides = array<i32>} : memref<7x40xf32, #tpu.memory_space<vmem>>, vector<7x8xf32>,
    %46 = vector.extract_strided_slice %24 {offsets = [0, 8], sizes = [7, 8], strides = [1, 1]} : vector<7x26xf32> to vector<7x8xf32>
    %47 = tpu.reciprocal %31 {approx = true} : vector<7x1xf32> -> vector<7x1xf32>
    %48 = vector.broadcast %47 : vector<7x1xf32> to vector<7x8xf32>
    %49 = arith.mulf %46, %48 : vector<7x8xf32>
    %c0_25 = arith.constant 0 : index
    %c24 = arith.constant 24 : index
    %50 = vector.load %arg8[%c0_25, %c24] : memref<7x40xf32, #tpu.memory_space<vmem>>, vector<7x8xf32>
    tpu.vector_store %arg8[%c0_25, %c24], %49 {strides = array<i32>} : memref<7x40xf32, #tpu.memory_space<vmem>>, vector<7x8xf32>,
    %51 = vector.extract_strided_slice %24 {offsets = [0, 16], sizes = [7, 8], strides = [1, 1]} : vector<7x26xf32> to vector<7x8xf32>
    %52 = tpu.reciprocal %32 {approx = true} : vector<7x1xf32> -> vector<7x1xf32>
    %53 = vector.broadcast %52 : vector<7x1xf32> to vector<7x8xf32>
    %54 = arith.mulf %51, %53 : vector<7x8xf32>
    %c0_26 = arith.constant 0 : index
    %c32 = arith.constant 32 : index
    %55 = vector.load %arg8[%c0_26, %c32] : memref<7x40xf32, #tpu.memory_space<vmem>>, vector<7x8xf32>
    tpu.vector_store %arg8[%c0_26, %c32], %54 {strides = array<i32>} : memref<7x40xf32, #tpu.memory_space<vmem>>, vector<7x8xf32>,
    return
  }
}

</mosaic_0001>

<llo_original>
// kernel: _isoline_forward.1
$region0: #{_isoline_forward.1}
  #allocation0 [shape = 'u32[]', space=smem, size = 0x4, offset = 0x4, fixed_abs, tag = 'smem constant byte address 0x4 - core index']
  #allocation1 [shape = 'u32[144,128]{1,0:T(1,128)}', space=vmem, size = 0x12000, scoped, tag = 'internal scratch']
  %s0 = inlined_call_operand.vmem [shape: f32[7,1], index: 0, kind: input, shape index: {}]
  %s1 = inlined_call_operand.vmem [shape: f32[7,1], index: 1, kind: input, shape index: {}]
  %s2 = inlined_call_operand.vmem [shape: f32[1,256], index: 2, kind: input, shape index: {}]
  %s3 = inlined_call_operand.vmem [shape: f32[1,256], index: 3, kind: input, shape index: {}]
  %s4 = inlined_call_operand.hbm [shape: bf16[256,1920], index: 4, kind: input, shape index: {}]
  %s5 = inlined_call_operand.vmem [shape: f32[8,1024], index: 5, kind: input, shape index: {}]
  %s6 = inlined_call_operand.vmem [shape: f32[8,640], index: 6, kind: input, shape index: {}]
  %s7 = inlined_call_operand.vmem [shape: f32[26,256], index: 7, kind: input, shape index: {}]
  %s8 = inlined_call_operand.vmem [shape: f32[7,40], index: 8, kind: output, shape index: {}]
  %s9 = sld [smem:[#allocation0]]
  $region46: #{_isoline_forward.1} parent=0
    _
  %s11 = ssub.s32 1, %s9
  %s12 = scalar_select 0, %s11, %s9
  $region1: #{_isoline_forward.1} parent=0
    #allocation2 [shape = 'u8[983040]{0}', space=vmem, size = 0xf0000, scoped, tag = 'input window, operand 4, single buffered']
    #allocation3 [shape = 's32[1]{0}', space=sflag, size = 0x4, scoped, tag = 'scoped memory for _isoline_forward.1']
    %13 = vsyncpa [#allocation3], 0
    // Predicated region
    $region2: #{_isoline_forward.1} parent=1 // pred_check
      _
    $region3: #{_isoline_forward.1} parent=1 // pred_check_branch
      %15 = sbr.rel (0) target = $region5
    $region4: #{_isoline_forward.1} parent=1 // pred_region
      _
    $region5: #{_isoline_forward.1} parent=1 // pred_fallthru
      _
    // Predicated region
    $region6: #{_isoline_forward.1} parent=1 // pred_check
      _
    $region7: #{_isoline_forward.1} parent=1 // pred_check_branch
      %17 = sbr.rel (0) target = $region9
    $region8: #{_isoline_forward.1} parent=1 // pred_region
      _
    $region9: #{_isoline_forward.1} parent=1 // pred_fallthru
      _
    // Predicated region
    $region10: #{_isoline_forward.1} parent=1 // pred_check
      _
    $region11: #{_isoline_forward.1} parent=1 // pred_check_branch
      %19 = sbr.rel (0) target = $region13
    $region12: #{_isoline_forward.1} parent=1 // pred_region
      _
    $region13: #{_isoline_forward.1} parent=1 // pred_fallthru
      _
    // Predicated region
    $region14: #{_isoline_forward.1} parent=1 // pred_check
      _
    $region15: #{_isoline_forward.1} parent=1 // pred_check_branch
      %21 = sbr.rel (0) target = $region17
    $region16: #{_isoline_forward.1} parent=1 // pred_region
      _
    $region17: #{_isoline_forward.1} parent=1 // pred_fallthru
      _
    // Predicated region
    $region18: #{_isoline_forward.1} parent=1 // pred_check
      _
    $region19: #{_isoline_forward.1} parent=1 // pred_check_branch
      %23 = sbr.rel (0) target = $region21
    $region20: #{_isoline_forward.1} parent=1 // pred_region
      %s25 = ssub.s32 30720, 30720
      %26 = vsyncadd [#allocation3], %s25
      %s27 = sshll.u32 [#allocation2], 4
      %s28 = int_to_ptr.vmem [resolvable:$true] %s27
      %33 = dma.hbm_to_vmem [thread:$0]  %s4, 30720, %s28, [#allocation3], 960, 960, 60
    $region21: #{_isoline_forward.1} parent=1 // pred_fallthru
      _
    // Predicated region
    $region22: #{_isoline_forward.1} parent=1 // pred_check
      _
    $region23: #{_isoline_forward.1} parent=1 // pred_check_branch
      %35 = sbr.rel (0) target = $region25
    $region24: #{_isoline_forward.1} parent=1 // pred_region
      _
    $region25: #{_isoline_forward.1} parent=1 // pred_fallthru
      _
    // Predicated region
    $region26: #{_isoline_forward.1} parent=1 // pred_check
      _
    $region27: #{_isoline_forward.1} parent=1 // pred_check_branch
      %37 = sbr.rel (0) target = $region29
    $region28: #{_isoline_forward.1} parent=1 // pred_region
      _
    $region29: #{_isoline_forward.1} parent=1 // pred_fallthru
      _
    // Predicated region
    $region30: #{_isoline_forward.1} parent=1 // pred_check
      _
    $region31: #{_isoline_forward.1} parent=1 // pred_check_branch
      %39 = sbr.rel (0) target = $region33
    $region32: #{_isoline_forward.1} parent=1 // pred_region
      _
    $region33: #{_isoline_forward.1} parent=1 // pred_fallthru
      _
    // Predicated region
    $region34: #{_isoline_forward.1} parent=1 // pred_check
      _
    $region35: #{_isoline_forward.1} parent=1 // pred_check_branch
      %41 = sbr.rel (0) target = $region37
    $region36: #{_isoline_forward.1} parent=1 // pred_region
      %42 = dma.done [#allocation3], 30720
    $region37: #{_isoline_forward.1} parent=1 // pred_fallthru
      _
    %v44 = vld [vmem:[%s2] sm:$0x3]
    %v45 = vld [vmem:[%s3] sm:$0x3]
    %v46 = vld [vmem:[%s0] sm:$0x7f]
    %48 = vset.pattern.permute.xlu0 0
    %49 = vperm.xlu0 %48, %v46
    %v50 = vpop.permute.xlu0 %49
    %v53 = vlaneseq
    %v54 = vshrl.u32 %v53, 7
    %v55 = vsub.s32 0, %v54
    %v56 = vrot.slane %v44, %v55
    %v57 = vlaneseq
    %v58 = vshrl.u32 %v57, 7
    %v59 = vsub.s32 1, %v58
    %v60 = vrot.slane %v44, %v59
    %v63 = vsub.f32 %v50, %v56
    %v64 = vsub.f32 %v50, %v60
    %v65 = vmul.f32 %v63, %v63
    %v66 = vmul.f32 %v64, %v64
    %v67 = vld [vmem:[%s1] sm:$0x7f]
    %69 = vset.pattern.permute.xlu0 0
    %70 = vperm.xlu0 %69, %v67
    %v71 = vpop.permute.xlu0 %70
    %v73 = vmul.f32 %v65, %v71
    %v74 = vmul.f32 %v66, %v71
    %v75 = vmul.f32 %v73, 1.442695
    %v76 = vpow.pop %v75
    %v77 = vmul.f32 %v74, 1.442695
    %v78 = vpow.pop %v77
    %v80 = vlaneseq
    %v81 = vshrl.u32 %v80, 7
    %v82 = vsub.s32 0, %v81
    %v83 = vrot.slane %v45, %v82
    %v84 = vlaneseq
    %v85 = vshrl.u32 %v84, 7
    %v86 = vsub.s32 1, %v85
    %v87 = vrot.slane %v45, %v86
    %v90 = vmul.f32 %v83, %v76
    %v91 = vmul.f32 %v87, %v78
    %v92 = vpack.c.bf16 %v90, %v90
    %v93 = vpack.c.bf16 %v91, %v91
    %v94 = vld [vmem:[#allocation2] sm:$0xff]
    %v95 = vld [vmem:[#allocation2 + $0x8] sm:$0xff]
    %v96 = vld [vmem:[#allocation2 + $0x10] sm:$0xff]
    %v97 = vld [vmem:[#allocation2 + $0x18] sm:$0xff]
    %v98 = vld [vmem:[#allocation2 + $0x20] sm:$0xff]
    %v99 = vld [vmem:[#allocation2 + $0x28] sm:$0xff]
    %v100 = vld [vmem:[#allocation2 + $0x30] sm:$0xff]
    %v101 = vld [vmem:[#allocation2 + $0x38] sm:$0xf]
    %v102 = vld [vmem:[#allocation2 + $0x3c] sm:$0xff]
    %v103 = vld [vmem:[#allocation2 + $0x44] sm:$0xff]
    %v104 = vld [vmem:[#allocation2 + $0x4c] sm:$0xff]
    %v105 = vld [vmem:[#allocation2 + $0x54] sm:$0xff]
    %v106 = vld [vmem:[#allocation2 + $0x5c] sm:$0xff]
    %v107 = vld [vmem:[#allocation2 + $0x64] sm:$0xff]
    %v108 = vld [vmem:[#allocation2 + $0x6c] sm:$0xff]
    %v109 = vld [vmem:[#allocation2 + $0x74] sm:$0xf]
    %v110 = vld [vmem:[#allocation2 + $0x78] sm:$0xff]
    %v111 = vld [vmem:[#allocation2 + $0x80] sm:$0xff]
    %v112 = vld [vmem:[#allocation2 + $0x88] sm:$0xff]
    %v113 = vld [vmem:[#allocation2 + $0x90] sm:$0xff]
    %v114 = vld [vmem:[#allocation2 + $0x98] sm:$0xff]
    %v115 = vld [vmem:[#allocation2 + $0xa0] sm:$0xff]
    %v116 = vld [vmem:[#allocation2 + $0xa8] sm:$0xff]
    %v117 = vld [vmem:[#allocation2 + $0xb0] sm:$0xf]
    %v118 = vld [vmem:[#allocation2 + $0xb4] sm:$0xff]
    %v119 = vld [vmem:[#allocation2 + $0xbc] sm:$0xff]
    %v120 = vld [vmem:[#allocation2 + $0xc4] sm:$0xff]
    %v121 = vld [vmem:[#allocation2 + $0xcc] sm:$0xff]
    %v122 = vld [vmem:[#allocation2 + $0xd4] sm:$0xff]
    %v123 = vld [vmem:[#allocation2 + $0xdc] sm:$0xff]
    %v124 = vld [vmem:[#allocation2 + $0xe4] sm:$0xff]
    %v125 = vld [vmem:[#allocation2 + $0xec] sm:$0xf]
    %v126 = vld [vmem:[#allocation2 + $0xf0] sm:$0xff]
    %v127 = vld [vmem:[#allocation2 + $0xf8] sm:$0xff]
    %v128 = vld [vmem:[#allocation2 + $0x100] sm:$0xff]
    %v129 = vld [vmem:[#allocation2 + $0x108] sm:$0xff]
    %v130 = vld [vmem:[#allocation2 + $0x110] sm:$0xff]
    %v131 = vld [vmem:[#allocation2 + $0x118] sm:$0xff]
    %v132 = vld [vmem:[#allocation2 + $0x120] sm:$0xff]
    %v133 = vld [vmem:[#allocation2 + $0x128] sm:$0xf]
    %v134 = vld [vmem:[#allocation2 + $0x12c] sm:$0xff]
    %v135 = vld [vmem:[#allocation2 + $0x134] sm:$0xff]
    %v136 = vld [vmem:[#allocation2 + $0x13c] sm:$0xff]
    %v137 = vld [vmem:[#allocation2 + $0x144] sm:$0xff]
    %v138 = vld [vmem:[#allocation2 + $0x14c] sm:$0xff]
    %v139 = vld [vmem:[#allocation2 + $0x154] sm:$0xff]
    %v140 = vld [vmem:[#allocation2 + $0x15c] sm:$0xff]
    %v141 = vld [vmem:[#allocation2 + $0x164] sm:$0xf]
    %v142 = vld [vmem:[#allocation2 + $0x168] sm:$0xff]
    %v143 = vld [vmem:[#allocation2 + $0x170] sm:$0xff]
    %v144 = vld [vmem:[#allocation2 + $0x178] sm:$0xff]
    %v145 = vld [vmem:[#allocation2 + $0x180] sm:$0xff]
    %v146 = vld [vmem:[#allocation2 + $0x188] sm:$0xff]
    %v147 = vld [vmem:[#allocation2 + $0x190] sm:$0xff]
    %v148 = vld [vmem:[#allocation2 + $0x198] sm:$0xff]
    %v149 = vld [vmem:[#allocation2 + $0x1a0] sm:$0xf]
    %v150 = vld [vmem:[#allocation2 + $0x1a4] sm:$0xff]
    %v151 = vld [vmem:[#allocation2 + $0x1ac] sm:$0xff]
    %v152 = vld [vmem:[#allocation2 + $0x1b4] sm:$0xff]
    %v153 = vld [vmem:[#allocation2 + $0x1bc] sm:$0xff]
    %v154 = vld [vmem:[#allocation2 + $0x1c4] sm:$0xff]
    %v155 = vld [vmem:[#allocation2 + $0x1cc] sm:$0xff]
    %v156 = vld [vmem:[#allocation2 + $0x1d4] sm:$0xff]
    %v157 = vld [vmem:[#allocation2 + $0x1dc] sm:$0xf]
    %v158 = vld [vmem:[#allocation2 + $0x1e0] sm:$0xff]
    %v159 = vld [vmem:[#allocation2 + $0x1e8] sm:$0xff]
    %v160 = vld [vmem:[#allocation2 + $0x1f0] sm:$0xff]
    %v161 = vld [vmem:[#allocation2 + $0x1f8] sm:$0xff]
    %v162 = vld [vmem:[#allocation2 + $0x200] sm:$0xff]
    %v163 = vld [vmem:[#allocation2 + $0x208] sm:$0xff]
    %v164 = vld [vmem:[#allocation2 + $0x210] sm:$0xff]
    %v165 = vld [vmem:[#allocation2 + $0x218] sm:$0xf]
    %v166 = vld [vmem:[#allocation2 + $0x21c] sm:$0xff]
    %v167 = vld [vmem:[#allocation2 + $0x224] sm:$0xff]
    %v168 = vld [vmem:[#allocation2 + $0x22c] sm:$0xff]
    %v169 = vld [vmem:[#allocation2 + $0x234] sm:$0xff]
    %v170 = vld [vmem:[#allocation2 + $0x23c] sm:$0xff]
    %v171 = vld [vmem:[#allocation2 + $0x244] sm:$0xff]
    %v172 = vld [vmem:[#allocation2 + $0x24c] sm:$0xff]
    %v173 = vld [vmem:[#allocation2 + $0x254] sm:$0xf]
    %v174 = vld [vmem:[#allocation2 + $0x258] sm:$0xff]
    %v175 = vld [vmem:[#allocation2 + $0x260] sm:$0xff]
    %v176 = vld [vmem:[#allocation2 + $0x268] sm:$0xff]
    %v177 = vld [vmem:[#allocation2 + $0x270] sm:$0xff]
    %v178 = vld [vmem:[#allocation2 + $0x278] sm:$0xff]
    %v179 = vld [vmem:[#allocation2 + $0x280] sm:$0xff]
    %v180 = vld [vmem:[#allocation2 + $0x288] sm:$0xff]
    %v181 = vld [vmem:[#allocation2 + $0x290] sm:$0xf]
    %v182 = vld [vmem:[#allocation2 + $0x294] sm:$0xff]
    %v183 = vld [vmem:[#allocation2 + $0x29c] sm:$0xff]
    %v184 = vld [vmem:[#allocation2 + $0x2a4] sm:$0xff]
    %v185 = vld [vmem:[#allocation2 + $0x2ac] sm:$0xff]
    %v186 = vld [vmem:[#allocation2 + $0x2b4] sm:$0xff]
    %v187 = vld [vmem:[#allocation2 + $0x2bc] sm:$0xff]
    %v188 = vld [vmem:[#allocation2 + $0x2c4] sm:$0xff]
    %v189 = vld [vmem:[#allocation2 + $0x2cc] sm:$0xf]
    %v190 = vld [vmem:[#allocation2 + $0x2d0] sm:$0xff]
    %v191 = vld [vmem:[#allocation2 + $0x2d8] sm:$0xff]
    %v192 = vld [vmem:[#allocation2 + $0x2e0] sm:$0xff]
    %v193 = vld [vmem:[#allocation2 + $0x2e8] sm:$0xff]
    %v194 = vld [vmem:[#allocation2 + $0x2f0] sm:$0xff]
    %v195 = vld [vmem:[#allocation2 + $0x2f8] sm:$0xff]
    %v196 = vld [vmem:[#allocation2 + $0x300] sm:$0xff]
    %v197 = vld [vmem:[#allocation2 + $0x308] sm:$0xf]
    %v198 = vld [vmem:[#allocation2 + $0x30c] sm:$0xff]
    %v199 = vld [vmem:[#allocation2 + $0x314] sm:$0xff]
    %v200 = vld [vmem:[#allocation2 + $0x31c] sm:$0xff]
    %v201 = vld [vmem:[#allocation2 + $0x324] sm:$0xff]
    %v202 = vld [vmem:[#allocation2 + $0x32c] sm:$0xff]
    %v203 = vld [vmem:[#allocation2 + $0x334] sm:$0xff]
    %v204 = vld [vmem:[#allocation2 + $0x33c] sm:$0xff]
    %v205 = vld [vmem:[#allocation2 + $0x344] sm:$0xf]
    %v206 = vld [vmem:[#allocation2 + $0x348] sm:$0xff]
    %v207 = vld [vmem:[#allocation2 + $0x350] sm:$0xff]
    %v208 = vld [vmem:[#allocation2 + $0x358] sm:$0xff]
    %v209 = vld [vmem:[#allocation2 + $0x360] sm:$0xff]
    %v210 = vld [vmem:[#allocation2 + $0x368] sm:$0xff]
    %v211 = vld [vmem:[#allocation2 + $0x370] sm:$0xff]
    %v212 = vld [vmem:[#allocation2 + $0x378] sm:$0xff]
    %v213 = vld [vmem:[#allocation2 + $0x380] sm:$0xf]
    %v214 = vld [vmem:[#allocation2 + $0x384] sm:$0xff]
    %v215 = vld [vmem:[#allocation2 + $0x38c] sm:$0xff]
    %v216 = vld [vmem:[#allocation2 + $0x394] sm:$0xff]
    %v217 = vld [vmem:[#allocation2 + $0x39c] sm:$0xff]
    %v218 = vld [vmem:[#allocation2 + $0x3a4] sm:$0xff]
    %v219 = vld [vmem:[#allocation2 + $0x3ac] sm:$0xff]
    %v220 = vld [vmem:[#allocation2 + $0x3b4] sm:$0xff]
    %v221 = vld [vmem:[#allocation2 + $0x3bc] sm:$0xf]
    %v222 = vld [vmem:[#allocation2 + $0x3c0] sm:$0xff]
    %v223 = vld [vmem:[#allocation2 + $0x3c8] sm:$0xff]
    %v224 = vld [vmem:[#allocation2 + $0x3d0] sm:$0xff]
    %v225 = vld [vmem:[#allocation2 + $0x3d8] sm:$0xff]
    %v226 = vld [vmem:[#allocation2 + $0x3e0] sm:$0xff]
    %v227 = vld [vmem:[#allocation2 + $0x3e8] sm:$0xff]
    %v228 = vld [vmem:[#allocation2 + $0x3f0] sm:$0xff]
    %v229 = vld [vmem:[#allocation2 + $0x3f8] sm:$0xf]
    %v230 = vld [vmem:[#allocation2 + $0x3fc] sm:$0xff]
    %v231 = vld [vmem:[#allocation2 + $0x404] sm:$0xff]
    %v232 = vld [vmem:[#allocation2 + $0x40c] sm:$0xff]
    %v233 = vld [vmem:[#allocation2 + $0x414] sm:$0xff]
    %v234 = vld [vmem:[#allocation2 + $0x41c] sm:$0xff]
    %v235 = vld [vmem:[#allocation2 + $0x424] sm:$0xff]
    %v236 = vld [vmem:[#allocation2 + $0x42c] sm:$0xff]
    %v237 = vld [vmem:[#allocation2 + $0x434] sm:$0xf]
    %v238 = vld [vmem:[#allocation2 + $0x438] sm:$0xff]
    %v239 = vld [vmem:[#allocation2 + $0x440] sm:$0xff]
    %v240 = vld [vmem:[#allocation2 + $0x448] sm:$0xff]
    %v241 = vld [vmem:[#allocation2 + $0x450] sm:$0xff]
    %v242 = vld [vmem:[#allocation2 + $0x458] sm:$0xff]
    %v243 = vld [vmem:[#allocation2 + $0x460] sm:$0xff]
    %v244 = vld [vmem:[#allocation2 + $0x468] sm:$0xff]
    %v245 = vld [vmem:[#allocation2 + $0x470] sm:$0xf]
    %v246 = vld [vmem:[#allocation2 + $0x474] sm:$0xff]
    %v247 = vld [vmem:[#allocation2 + $0x47c] sm:$0xff]
    %v248 = vld [vmem:[#allocation2 + $0x484] sm:$0xff]
    %v249 = vld [vmem:[#allocation2 + $0x48c] sm:$0xff]
    %v250 = vld [vmem:[#allocation2 + $0x494] sm:$0xff]
    %v251 = vld [vmem:[#allocation2 + $0x49c] sm:$0xff]
    %v252 = vld [vmem:[#allocation2 + $0x4a4] sm:$0xff]
    %v253 = vld [vmem:[#allocation2 + $0x4ac] sm:$0xf]
    %v254 = vld [vmem:[#allocation2 + $0x4b0] sm:$0xff]
    %v255 = vld [vmem:[#allocation2 + $0x4b8] sm:$0xff]
    %v256 = vld [vmem:[#allocation2 + $0x4c0] sm:$0xff]
    %v257 = vld [vmem:[#allocation2 + $0x4c8] sm:$0xff]
    %v258 = vld [vmem:[#allocation2 + $0x4d0] sm:$0xff]
    %v259 = vld [vmem:[#allocation2 + $0x4d8] sm:$0xff]
    %v260 = vld [vmem:[#allocation2 + $0x4e0] sm:$0xff]
    %v261 = vld [vmem:[#allocation2 + $0x4e8] sm:$0xf]
    %v262 = vld [vmem:[#allocation2 + $0x4ec] sm:$0xff]
    %v263 = vld [vmem:[#allocation2 + $0x4f4] sm:$0xff]
    %v264 = vld [vmem:[#allocation2 + $0x4fc] sm:$0xff]
    %v265 = vld [vmem:[#allocation2 + $0x504] sm:$0xff]
    %v266 = vld [vmem:[#allocation2 + $0x50c] sm:$0xff]
    %v267 = vld [vmem:[#allocation2 + $0x514] sm:$0xff]
    %v268 = vld [vmem:[#allocation2 + $0x51c] sm:$0xff]
    %v269 = vld [vmem:[#allocation2 + $0x524] sm:$0xf]
    %v270 = vld [vmem:[#allocation2 + $0x528] sm:$0xff]
    %v271 = vld [vmem:[#allocation2 + $0x530] sm:$0xff]
    %v272 = vld [vmem:[#allocation2 + $0x538] sm:$0xff]
    %v273 = vld [vmem:[#allocation2 + $0x540] sm:$0xff]
    %v274 = vld [vmem:[#allocation2 + $0x548] sm:$0xff]
    %v275 = vld [vmem:[#allocation2 + $0x550] sm:$0xff]
    %v276 = vld [vmem:[#allocation2 + $0x558] sm:$0xff]
    %v277 = vld [vmem:[#allocation2 + $0x560] sm:$0xf]
    %v278 = vld [vmem:[#allocation2 + $0x564] sm:$0xff]
    %v279 = vld [vmem:[#allocation2 + $0x56c] sm:$0xff]
    %v280 = vld [vmem:[#allocation2 + $0x574] sm:$0xff]
    %v281 = vld [vmem:[#allocation2 + $0x57c] sm:$0xff]
    %v282 = vld [vmem:[#allocation2 + $0x584] sm:$0xff]
    %v283 = vld [vmem:[#allocation2 + $0x58c] sm:$0xff]
    %v284 = vld [vmem:[#allocation2 + $0x594] sm:$0xff]
    %v285 = vld [vmem:[#allocation2 + $0x59c] sm:$0xf]
    %v286 = vld [vmem:[#allocation2 + $0x5a0] sm:$0xff]
    %v287 = vld [vmem:[#allocation2 + $0x5a8] sm:$0xff]
    %v288 = vld [vmem:[#allocation2 + $0x5b0] sm:$0xff]
    %v289 = vld [vmem:[#allocation2 + $0x5b8] sm:$0xff]
    %v290 = vld [vmem:[#allocation2 + $0x5c0] sm:$0xff]
    %v291 = vld [vmem:[#allocation2 + $0x5c8] sm:$0xff]
    %v292 = vld [vmem:[#allocation2 + $0x5d0] sm:$0xff]
    %v293 = vld [vmem:[#allocation2 + $0x5d8] sm:$0xf]
    %v294 = vld [vmem:[#allocation2 + $0x5dc] sm:$0xff]
    %v295 = vld [vmem:[#allocation2 + $0x5e4] sm:$0xff]
    %v296 = vld [vmem:[#allocation2 + $0x5ec] sm:$0xff]
    %v297 = vld [vmem:[#allocation2 + $0x5f4] sm:$0xff]
    %v298 = vld [vmem:[#allocation2 + $0x5fc] sm:$0xff]
    %v299 = vld [vmem:[#allocation2 + $0x604] sm:$0xff]
    %v300 = vld [vmem:[#allocation2 + $0x60c] sm:$0xff]
    %v301 = vld [vmem:[#allocation2 + $0x614] sm:$0xf]
    %v302 = vld [vmem:[#allocation2 + $0x618] sm:$0xff]
    %v303 = vld [vmem:[#allocation2 + $0x620] sm:$0xff]
    %v304 = vld [vmem:[#allocation2 + $0x628] sm:$0xff]
    %v305 = vld [vmem:[#allocation2 + $0x630] sm:$0xff]
    %v306 = vld [vmem:[#allocation2 + $0x638] sm:$0xff]
    %v307 = vld [vmem:[#allocation2 + $0x640] sm:$0xff]
    %v308 = vld [vmem:[#allocation2 + $0x648] sm:$0xff]
    %v309 = vld [vmem:[#allocation2 + $0x650] sm:$0xf]
    %v310 = vld [vmem:[#allocation2 + $0x654] sm:$0xff]
    %v311 = vld [vmem:[#allocation2 + $0x65c] sm:$0xff]
    %v312 = vld [vmem:[#allocation2 + $0x664] sm:$0xff]
    %v313 = vld [vmem:[#allocation2 + $0x66c] sm:$0xff]
    %v314 = vld [vmem:[#allocation2 + $0x674] sm:$0xff]
    %v315 = vld [vmem:[#allocation2 + $0x67c] sm:$0xff]
    %v316 = vld [vmem:[#allocation2 + $0x684] sm:$0xff]
    %v317 = vld [vmem:[#allocation2 + $0x68c] sm:$0xf]
    %v318 = vld [vmem:[#allocation2 + $0x690] sm:$0xff]
    %v319 = vld [vmem:[#allocation2 + $0x698] sm:$0xff]
    %v320 = vld [vmem:[#allocation2 + $0x6a0] sm:$0xff]
    %v321 = vld [vmem:[#allocation2 + $0x6a8] sm:$0xff]
    %v322 = vld [vmem:[#allocation2 + $0x6b0] sm:$0xff]
    %v323 = vld [vmem:[#allocation2 + $0x6b8] sm:$0xff]
    %v324 = vld [vmem:[#allocation2 + $0x6c0] sm:$0xff]
    %v325 = vld [vmem:[#allocation2 + $0x6c8] sm:$0xf]
    %v326 = vld [vmem:[#allocation2 + $0x6cc] sm:$0xff]
    %v327 = vld [vmem:[#allocation2 + $0x6d4] sm:$0xff]
    %v328 = vld [vmem:[#allocation2 + $0x6dc] sm:$0xff]
    %v329 = vld [vmem:[#allocation2 + $0x6e4] sm:$0xff]
    %v330 = vld [vmem:[#allocation2 + $0x6ec] sm:$0xff]
    %v331 = vld [vmem:[#allocation2 + $0x6f4] sm:$0xff]
    %v332 = vld [vmem:[#allocation2 + $0x6fc] sm:$0xff]
    %v333 = vld [vmem:[#allocation2 + $0x704] sm:$0xf]
    %v334 = vld [vmem:[#allocation2 + $0x708] sm:$0xff]
    %v335 = vld [vmem:[#allocation2 + $0x710] sm:$0xff]
    %v336 = vld [vmem:[#allocation2 + $0x718] sm:$0xff]
    %v337 = vld [vmem:[#allocation2 + $0x720] sm:$0xff]
    %v338 = vld [vmem:[#allocation2 + $0x728] sm:$0xff]
    %v339 = vld [vmem:[#allocation2 + $0x730] sm:$0xff]
    %v340 = vld [vmem:[#allocation2 + $0x738] sm:$0xff]
    %v341 = vld [vmem:[#allocation2 + $0x740] sm:$0xf]
    %v342 = vld [vmem:[#allocation2 + $0x744] sm:$0xff]
    %v343 = vld [vmem:[#allocation2 + $0x74c] sm:$0xff]
    %v344 = vld [vmem:[#allocation2 + $0x754] sm:$0xff]
    %v345 = vld [vmem:[#allocation2 + $0x75c] sm:$0xff]
    %v346 = vld [vmem:[#allocation2 + $0x764] sm:$0xff]
    %v347 = vld [vmem:[#allocation2 + $0x76c] sm:$0xff]
    %v348 = vld [vmem:[#allocation2 + $0x774] sm:$0xff]
    %v349 = vld [vmem:[#allocation2 + $0x77c] sm:$0xf]
    %v606 = vunpack.c.l.b16 %v94
    %v607 = vunpack.c.h.b16 %v94
    %v608 = vunpack.c.l.b16 %v95
    %v609 = vunpack.c.h.b16 %v95
    %v610 = vunpack.c.l.b16 %v96
    %v611 = vunpack.c.h.b16 %v96
    %v612 = vunpack.c.l.b16 %v97
    %v613 = vunpack.c.h.b16 %v97
    %v614 = vunpack.c.l.b16 %v98
    %v615 = vunpack.c.h.b16 %v98
    %v616 = vunpack.c.l.b16 %v99
    %v617 = vunpack.c.h.b16 %v99
    %v618 = vunpack.c.l.b16 %v100
    %v619 = vunpack.c.h.b16 %v100
    %v620 = vunpack.c.l.b16 %v101
    %v621 = vunpack.c.l.b16 %v102
    %v622 = vunpack.c.h.b16 %v102
    %v623 = vunpack.c.l.b16 %v103
    %v624 = vunpack.c.h.b16 %v103
    %v625 = vunpack.c.l.b16 %v104
    %v626 = vunpack.c.h.b16 %v104
    %v627 = vunpack.c.l.b16 %v105
    %v628 = vunpack.c.h.b16 %v105
    %v629 = vunpack.c.l.b16 %v106
    %v630 = vunpack.c.h.b16 %v106
    %v631 = vunpack.c.l.b16 %v107
    %v632 = vunpack.c.h.b16 %v107
    %v633 = vunpack.c.l.b16 %v108
    %v634 = vunpack.c.h.b16 %v108
    %v635 = vunpack.c.l.b16 %v109
    %v636 = vunpack.c.l.b16 %v110
    %v637 = vunpack.c.h.b16 %v110
    %v638 = vunpack.c.l.b16 %v111
    %v639 = vunpack.c.h.b16 %v111
    %v640 = vunpack.c.l.b16 %v112
    %v641 = vunpack.c.h.b16 %v112
    %v642 = vunpack.c.l.b16 %v113
    %v643 = vunpack.c.h.b16 %v113
    %v644 = vunpack.c.l.b16 %v114
    %v645 = vunpack.c.h.b16 %v114
    %v646 = vunpack.c.l.b16 %v115
    %v647 = vunpack.c.h.b16 %v115
    %v648 = vunpack.c.l.b16 %v116
    %v649 = vunpack.c.h.b16 %v116
    %v650 = vunpack.c.l.b16 %v117
    %v651 = vunpack.c.l.b16 %v118
    %v652 = vunpack.c.h.b16 %v118
    %v653 = vunpack.c.l.b16 %v119
    %v654 = vunpack.c.h.b16 %v119
    %v655 = vunpack.c.l.b16 %v120
    %v656 = vunpack.c.h.b16 %v120
    %v657 = vunpack.c.l.b16 %v121
    %v658 = vunpack.c.h.b16 %v121
    %v659 = vunpack.c.l.b16 %v122
    %v660 = vunpack.c.h.b16 %v122
    %v661 = vunpack.c.l.b16 %v123
    %v662 = vunpack.c.h.b16 %v123
    %v663 = vunpack.c.l.b16 %v124
    %v664 = vunpack.c.h.b16 %v124
    %v665 = vunpack.c.l.b16 %v125
    %v666 = vunpack.c.l.b16 %v126
    %v667 = vunpack.c.h.b16 %v126
    %v668 = vunpack.c.l.b16 %v127
    %v669 = vunpack.c.h.b16 %v127
    %v670 = vunpack.c.l.b16 %v128
    %v671 = vunpack.c.h.b16 %v128
    %v672 = vunpack.c.l.b16 %v129
    %v673 = vunpack.c.h.b16 %v129
    %v674 = vunpack.c.l.b16 %v130
    %v675 = vunpack.c.h.b16 %v130
    %v676 = vunpack.c.l.b16 %v131
    %v677 = vunpack.c.h.b16 %v131
    %v678 = vunpack.c.l.b16 %v132
    %v679 = vunpack.c.h.b16 %v132
    %v680 = vunpack.c.l.b16 %v133
    %v681 = vunpack.c.l.b16 %v134
    %v682 = vunpack.c.h.b16 %v134
    %v683 = vunpack.c.l.b16 %v135
    %v684 = vunpack.c.h.b16 %v135
    %v685 = vunpack.c.l.b16 %v136
    %v686 = vunpack.c.h.b16 %v136
    %v687 = vunpack.c.l.b16 %v137
    %v688 = vunpack.c.h.b16 %v137
    %v689 = vunpack.c.l.b16 %v138
    %v690 = vunpack.c.h.b16 %v138
    %v691 = vunpack.c.l.b16 %v139
    %v692 = vunpack.c.h.b16 %v139
    %v693 = vunpack.c.l.b16 %v140
    %v694 = vunpack.c.h.b16 %v140
    %v695 = vunpack.c.l.b16 %v141
    %v696 = vunpack.c.l.b16 %v142
    %v697 = vunpack.c.h.b16 %v142
    %v698 = vunpack.c.l.b16 %v143
    %v699 = vunpack.c.h.b16 %v143
    %v700 = vunpack.c.l.b16 %v144
    %v701 = vunpack.c.h.b16 %v144
    %v702 = vunpack.c.l.b16 %v145
    %v703 = vunpack.c.h.b16 %v145
    %v704 = vunpack.c.l.b16 %v146
    %v705 = vunpack.c.h.b16 %v146
    %v706 = vunpack.c.l.b16 %v147
    %v707 = vunpack.c.h.b16 %v147
    %v708 = vunpack.c.l.b16 %v148
    %v709 = vunpack.c.h.b16 %v148
    %v710 = vunpack.c.l.b16 %v149
    %v711 = vunpack.c.l.b16 %v150
    %v712 = vunpack.c.h.b16 %v150
    %v713 = vunpack.c.l.b16 %v151
    %v714 = vunpack.c.h.b16 %v151
    %v715 = vunpack.c.l.b16 %v152
    %v716 = vunpack.c.h.b16 %v152
    %v717 = vunpack.c.l.b16 %v153
    %v718 = vunpack.c.h.b16 %v153
    %v719 = vunpack.c.l.b16 %v154
    %v720 = vunpack.c.h.b16 %v154
    %v721 = vunpack.c.l.b16 %v155
    %v722 = vunpack.c.h.b16 %v155
    %v723 = vunpack.c.l.b16 %v156
    %v724 = vunpack.c.h.b16 %v156
    %v725 = vunpack.c.l.b16 %v157
    %v726 = vunpack.c.l.b16 %v158
    %v727 = vunpack.c.h.b16 %v158
    %v728 = vunpack.c.l.b16 %v159
    %v729 = vunpack.c.h.b16 %v159
    %v730 = vunpack.c.l.b16 %v160
    %v731 = vunpack.c.h.b16 %v160
    %v732 = vunpack.c.l.b16 %v161
    %v733 = vunpack.c.h.b16 %v161
    %v734 = vunpack.c.l.b16 %v162
    %v735 = vunpack.c.h.b16 %v162
    %v736 = vunpack.c.l.b16 %v163
    %v737 = vunpack.c.h.b16 %v163
    %v738 = vunpack.c.l.b16 %v164
    %v739 = vunpack.c.h.b16 %v164
    %v740 = vunpack.c.l.b16 %v165
    %v741 = vunpack.c.l.b16 %v166
    %v742 = vunpack.c.h.b16 %v166
    %v743 = vunpack.c.l.b16 %v167
    %v744 = vunpack.c.h.b16 %v167
    %v745 = vunpack.c.l.b16 %v168
    %v746 = vunpack.c.h.b16 %v168
    %v747 = vunpack.c.l.b16 %v169
    %v748 = vunpack.c.h.b16 %v169
    %v749 = vunpack.c.l.b16 %v170
    %v750 = vunpack.c.h.b16 %v170
    %v751 = vunpack.c.l.b16 %v171
    %v752 = vunpack.c.h.b16 %v171
    %v753 = vunpack.c.l.b16 %v172
    %v754 = vunpack.c.h.b16 %v172
    %v755 = vunpack.c.l.b16 %v173
    %v756 = vunpack.c.l.b16 %v174
    %v757 = vunpack.c.h.b16 %v174
    %v758 = vunpack.c.l.b16 %v175
    %v759 = vunpack.c.h.b16 %v175
    %v760 = vunpack.c.l.b16 %v176
    %v761 = vunpack.c.h.b16 %v176
    %v762 = vunpack.c.l.b16 %v177
    %v763 = vunpack.c.h.b16 %v177
    %v764 = vunpack.c.l.b16 %v178
    %v765 = vunpack.c.h.b16 %v178
    %v766 = vunpack.c.l.b16 %v179
    %v767 = vunpack.c.h.b16 %v179
    %v768 = vunpack.c.l.b16 %v180
    %v769 = vunpack.c.h.b16 %v180
    %v770 = vunpack.c.l.b16 %v181
    %v771 = vunpack.c.l.b16 %v182
    %v772 = vunpack.c.h.b16 %v182
    %v773 = vunpack.c.l.b16 %v183
    %v774 = vunpack.c.h.b16 %v183
    %v775 = vunpack.c.l.b16 %v184
    %v776 = vunpack.c.h.b16 %v184
    %v777 = vunpack.c.l.b16 %v185
    %v778 = vunpack.c.h.b16 %v185
    %v779 = vunpack.c.l.b16 %v186
    %v780 = vunpack.c.h.b16 %v186
    %v781 = vunpack.c.l.b16 %v187
    %v782 = vunpack.c.h.b16 %v187
    %v783 = vunpack.c.l.b16 %v188
    %v784 = vunpack.c.h.b16 %v188
    %v785 = vunpack.c.l.b16 %v189
    %v786 = vunpack.c.l.b16 %v190
    %v787 = vunpack.c.h.b16 %v190
    %v788 = vunpack.c.l.b16 %v191
    %v789 = vunpack.c.h.b16 %v191
    %v790 = vunpack.c.l.b16 %v192
    %v791 = vunpack.c.h.b16 %v192
    %v792 = vunpack.c.l.b16 %v193
    %v793 = vunpack.c.h.b16 %v193
    %v794 = vunpack.c.l.b16 %v194
    %v795 = vunpack.c.h.b16 %v194
    %v796 = vunpack.c.l.b16 %v195
    %v797 = vunpack.c.h.b16 %v195
    %v798 = vunpack.c.l.b16 %v196
    %v799 = vunpack.c.h.b16 %v196
    %v800 = vunpack.c.l.b16 %v197
    %v801 = vunpack.c.l.b16 %v198
    %v802 = vunpack.c.h.b16 %v198
    %v803 = vunpack.c.l.b16 %v199
    %v804 = vunpack.c.h.b16 %v199
    %v805 = vunpack.c.l.b16 %v200
    %v806 = vunpack.c.h.b16 %v200
    %v807 = vunpack.c.l.b16 %v201
    %v808 = vunpack.c.h.b16 %v201
    %v809 = vunpack.c.l.b16 %v202
    %v810 = vunpack.c.h.b16 %v202
    %v811 = vunpack.c.l.b16 %v203
    %v812 = vunpack.c.h.b16 %v203
    %v813 = vunpack.c.l.b16 %v204
    %v814 = vunpack.c.h.b16 %v204
    %v815 = vunpack.c.l.b16 %v205
    %v816 = vunpack.c.l.b16 %v206
    %v817 = vunpack.c.h.b16 %v206
    %v818 = vunpack.c.l.b16 %v207
    %v819 = vunpack.c.h.b16 %v207
    %v820 = vunpack.c.l.b16 %v208
    %v821 = vunpack.c.h.b16 %v208
    %v822 = vunpack.c.l.b16 %v209
    %v823 = vunpack.c.h.b16 %v209
    %v824 = vunpack.c.l.b16 %v210
    %v825 = vunpack.c.h.b16 %v210
    %v826 = vunpack.c.l.b16 %v211
    %v827 = vunpack.c.h.b16 %v211
    %v828 = vunpack.c.l.b16 %v212
    %v829 = vunpack.c.h.b16 %v212
    %v830 = vunpack.c.l.b16 %v213
    %v831 = vunpack.c.l.b16 %v214
    %v832 = vunpack.c.h.b16 %v214
    %v833 = vunpack.c.l.b16 %v215
    %v834 = vunpack.c.h.b16 %v215
    %v835 = vunpack.c.l.b16 %v216
    %v836 = vunpack.c.h.b16 %v216
    %v837 = vunpack.c.l.b16 %v217
    %v838 = vunpack.c.h.b16 %v217
    %v839 = vunpack.c.l.b16 %v218
    %v840 = vunpack.c.h.b16 %v218
    %v841 = vunpack.c.l.b16 %v219
    %v842 = vunpack.c.h.b16 %v219
    %v843 = vunpack.c.l.b16 %v220
    %v844 = vunpack.c.h.b16 %v220
    %v845 = vunpack.c.l.b16 %v221
    %v846 = vunpack.c.l.b16 %v222
    %v847 = vunpack.c.h.b16 %v222
    %v848 = vunpack.c.l.b16 %v223
    %v849 = vunpack.c.h.b16 %v223
    %v850 = vunpack.c.l.b16 %v224
    %v851 = vunpack.c.h.b16 %v224
    %v852 = vunpack.c.l.b16 %v225
    %v853 = vunpack.c.h.b16 %v225
    %v854 = vunpack.c.l.b16 %v226
    %v855 = vunpack.c.h.b16 %v226
    %v856 = vunpack.c.l.b16 %v227
    %v857 = vunpack.c.h.b16 %v227
    %v858 = vunpack.c.l.b16 %v228
    %v859 = vunpack.c.h.b16 %v228
    %v860 = vunpack.c.l.b16 %v229
    %v861 = vunpack.c.l.b16 %v230
    %v862 = vunpack.c.h.b16 %v230
    %v863 = vunpack.c.l.b16 %v231
    %v864 = vunpack.c.h.b16 %v231
    %v865 = vunpack.c.l.b16 %v232
    %v866 = vunpack.c.h.b16 %v232
    %v867 = vunpack.c.l.b16 %v233
    %v868 = vunpack.c.h.b16 %v233
    %v869 = vunpack.c.l.b16 %v234
    %v870 = vunpack.c.h.b16 %v234
    %v871 = vunpack.c.l.b16 %v235
    %v872 = vunpack.c.h.b16 %v235
    %v873 = vunpack.c.l.b16 %v236
    %v874 = vunpack.c.h.b16 %v236
    %v875 = vunpack.c.l.b16 %v237
    %v876 = vunpack.c.l.b16 %v238
    %v877 = vunpack.c.h.b16 %v238
    %v878 = vunpack.c.l.b16 %v239
    %v879 = vunpack.c.h.b16 %v239
    %v880 = vunpack.c.l.b16 %v240
    %v881 = vunpack.c.h.b16 %v240
    %v882 = vunpack.c.l.b16 %v241
    %v883 = vunpack.c.h.b16 %v241
    %v884 = vunpack.c.l.b16 %v242
    %v885 = vunpack.c.h.b16 %v242
    %v886 = vunpack.c.l.b16 %v243
    %v887 = vunpack.c.h.b16 %v243
    %v888 = vunpack.c.l.b16 %v244
    %v889 = vunpack.c.h.b16 %v244
    %v890 = vunpack.c.l.b16 %v245
    %v891 = vunpack.c.l.b16 %v246
    %v892 = vunpack.c.h.b16 %v246
    %v893 = vunpack.c.l.b16 %v247
    %v894 = vunpack.c.h.b16 %v247
    %v895 = vunpack.c.l.b16 %v248
    %v896 = vunpack.c.h.b16 %v248
    %v897 = vunpack.c.l.b16 %v249
    %v898 = vunpack.c.h.b16 %v249
    %v899 = vunpack.c.l.b16 %v250
    %v900 = vunpack.c.h.b16 %v250
    %v901 = vunpack.c.l.b16 %v251
    %v902 = vunpack.c.h.b16 %v251
    %v903 = vunpack.c.l.b16 %v252
    %v904 = vunpack.c.h.b16 %v252
    %v905 = vunpack.c.l.b16 %v253
    %v906 = vunpack.c.l.b16 %v254
    %v907 = vunpack.c.h.b16 %v254
    %v908 = vunpack.c.l.b16 %v255
    %v909 = vunpack.c.h.b16 %v255
    %v910 = vunpack.c.l.b16 %v256
    %v911 = vunpack.c.h.b16 %v256
    %v912 = vunpack.c.l.b16 %v257
    %v913 = vunpack.c.h.b16 %v257
    %v914 = vunpack.c.l.b16 %v258
    %v915 = vunpack.c.h.b16 %v258
    %v916 = vunpack.c.l.b16 %v259
    %v917 = vunpack.c.h.b16 %v259
    %v918 = vunpack.c.l.b16 %v260
    %v919 = vunpack.c.h.b16 %v260
    %v920 = vunpack.c.l.b16 %v261
    %v921 = vunpack.c.l.b16 %v262
    %v922 = vunpack.c.h.b16 %v262
    %v923 = vunpack.c.l.b16 %v263
    %v924 = vunpack.c.h.b16 %v263
    %v925 = vunpack.c.l.b16 %v264
    %v926 = vunpack.c.h.b16 %v264
    %v927 = vunpack.c.l.b16 %v265
    %v928 = vunpack.c.h.b16 %v265
    %v929 = vunpack.c.l.b16 %v266
    %v930 = vunpack.c.h.b16 %v266
    %v931 = vunpack.c.l.b16 %v267
    %v932 = vunpack.c.h.b16 %v267
    %v933 = vunpack.c.l.b16 %v268
    %v934 = vunpack.c.h.b16 %v268
    %v935 = vunpack.c.l.b16 %v269
    %v936 = vunpack.c.l.b16 %v270
    %v937 = vunpack.c.h.b16 %v270
    %v938 = vunpack.c.l.b16 %v271
    %v939 = vunpack.c.h.b16 %v271
    %v940 = vunpack.c.l.b16 %v272
    %v941 = vunpack.c.h.b16 %v272
    %v942 = vunpack.c.l.b16 %v273
    %v943 = vunpack.c.h.b16 %v273
    %v944 = vunpack.c.l.b16 %v274
    %v945 = vunpack.c.h.b16 %v274
    %v946 = vunpack.c.l.b16 %v275
    %v947 = vunpack.c.h.b16 %v275
    %v948 = vunpack.c.l.b16 %v276
    %v949 = vunpack.c.h.b16 %v276
    %v950 = vunpack.c.l.b16 %v277
    %v951 = vunpack.c.l.b16 %v278
    %v952 = vunpack.c.h.b16 %v278
    %v953 = vunpack.c.l.b16 %v279
    %v954 = vunpack.c.h.b16 %v279
    %v955 = vunpack.c.l.b16 %v280
    %v956 = vunpack.c.h.b16 %v280
    %v957 = vunpack.c.l.b16 %v281
    %v958 = vunpack.c.h.b16 %v281
    %v959 = vunpack.c.l.b16 %v282
    %v960 = vunpack.c.h.b16 %v282
    %v961 = vunpack.c.l.b16 %v283
    %v962 = vunpack.c.h.b16 %v283
    %v963 = vunpack.c.l.b16 %v284
    %v964 = vunpack.c.h.b16 %v284
    %v965 = vunpack.c.l.b16 %v285
    %v966 = vunpack.c.l.b16 %v286
    %v967 = vunpack.c.h.b16 %v286
    %v968 = vunpack.c.l.b16 %v287
    %v969 = vunpack.c.h.b16 %v287
    %v970 = vunpack.c.l.b16 %v288
    %v971 = vunpack.c.h.b16 %v288
    %v972 = vunpack.c.l.b16 %v289
    %v973 = vunpack.c.h.b16 %v289
    %v974 = vunpack.c.l.b16 %v290
    %v975 = vunpack.c.h.b16 %v290
    %v976 = vunpack.c.l.b16 %v291
    %v977 = vunpack.c.h.b16 %v291
    %v978 = vunpack.c.l.b16 %v292
    %v979 = vunpack.c.h.b16 %v292
    %v980 = vunpack.c.l.b16 %v293
    %v981 = vunpack.c.l.b16 %v294
    %v982 = vunpack.c.h.b16 %v294
    %v983 = vunpack.c.l.b16 %v295
    %v984 = vunpack.c.h.b16 %v295
    %v985 = vunpack.c.l.b16 %v296
    %v986 = vunpack.c.h.b16 %v296
    %v987 = vunpack.c.l.b16 %v297
    %v988 = vunpack.c.h.b16 %v297
    %v989 = vunpack.c.l.b16 %v298
    %v990 = vunpack.c.h.b16 %v298
    %v991 = vunpack.c.l.b16 %v299
    %v992 = vunpack.c.h.b16 %v299
    %v993 = vunpack.c.l.b16 %v300
    %v994 = vunpack.c.h.b16 %v300
    %v995 = vunpack.c.l.b16 %v301
    %v996 = vunpack.c.l.b16 %v302
    %v997 = vunpack.c.h.b16 %v302
    %v998 = vunpack.c.l.b16 %v303
    %v999 = vunpack.c.h.b16 %v303
    %v1000 = vunpack.c.l.b16 %v304
    %v1001 = vunpack.c.h.b16 %v304
    %v1002 = vunpack.c.l.b16 %v305
    %v1003 = vunpack.c.h.b16 %v305
    %v1004 = vunpack.c.l.b16 %v306
    %v1005 = vunpack.c.h.b16 %v306
    %v1006 = vunpack.c.l.b16 %v307
    %v1007 = vunpack.c.h.b16 %v307
    %v1008 = vunpack.c.l.b16 %v308
    %v1009 = vunpack.c.h.b16 %v308
    %v1010 = vunpack.c.l.b16 %v309
    %v1011 = vunpack.c.l.b16 %v310
    %v1012 = vunpack.c.h.b16 %v310
    %v1013 = vunpack.c.l.b16 %v311
    %v1014 = vunpack.c.h.b16 %v311
    %v1015 = vunpack.c.l.b16 %v312
    %v1016 = vunpack.c.h.b16 %v312
    %v1017 = vunpack.c.l.b16 %v313
    %v1018 = vunpack.c.h.b16 %v313
    %v1019 = vunpack.c.l.b16 %v314
    %v1020 = vunpack.c.h.b16 %v314
    %v1021 = vunpack.c.l.b16 %v315
    %v1022 = vunpack.c.h.b16 %v315
    %v1023 = vunpack.c.l.b16 %v316
    %v1024 = vunpack.c.h.b16 %v316
    %v1025 = vunpack.c.l.b16 %v317
    %v1026 = vunpack.c.l.b16 %v318
    %v1027 = vunpack.c.h.b16 %v318
    %v1028 = vunpack.c.l.b16 %v319
    %v1029 = vunpack.c.h.b16 %v319
    %v1030 = vunpack.c.l.b16 %v320
    %v1031 = vunpack.c.h.b16 %v320
    %v1032 = vunpack.c.l.b16 %v321
    %v1033 = vunpack.c.h.b16 %v321
    %v1034 = vunpack.c.l.b16 %v322
    %v1035 = vunpack.c.h.b16 %v322
    %v1036 = vunpack.c.l.b16 %v323
    %v1037 = vunpack.c.h.b16 %v323
    %v1038 = vunpack.c.l.b16 %v324
    %v1039 = vunpack.c.h.b16 %v324
    %v1040 = vunpack.c.l.b16 %v325
    %v1041 = vunpack.c.l.b16 %v326
    %v1042 = vunpack.c.h.b16 %v326
    %v1043 = vunpack.c.l.b16 %v327
    %v1044 = vunpack.c.h.b16 %v327
    %v1045 = vunpack.c.l.b16 %v328
    %v1046 = vunpack.c.h.b16 %v328
    %v1047 = vunpack.c.l.b16 %v329
    %v1048 = vunpack.c.h.b16 %v329
    %v1049 = vunpack.c.l.b16 %v330
    %v1050 = vunpack.c.h.b16 %v330
    %v1051 = vunpack.c.l.b16 %v331
    %v1052 = vunpack.c.h.b16 %v331
    %v1053 = vunpack.c.l.b16 %v332
    %v1054 = vunpack.c.h.b16 %v332
    %v1055 = vunpack.c.l.b16 %v333
    %v1056 = vunpack.c.l.b16 %v334
    %v1057 = vunpack.c.h.b16 %v334
    %v1058 = vunpack.c.l.b16 %v335
    %v1059 = vunpack.c.h.b16 %v335
    %v1060 = vunpack.c.l.b16 %v336
    %v1061 = vunpack.c.h.b16 %v336
    %v1062 = vunpack.c.l.b16 %v337
    %v1063 = vunpack.c.h.b16 %v337
    %v1064 = vunpack.c.l.b16 %v338
    %v1065 = vunpack.c.h.b16 %v338
    %v1066 = vunpack.c.l.b16 %v339
    %v1067 = vunpack.c.h.b16 %v339
    %v1068 = vunpack.c.l.b16 %v340
    %v1069 = vunpack.c.h.b16 %v340
    %v1070 = vunpack.c.l.b16 %v341
    %v1071 = vunpack.c.l.b16 %v342
    %v1072 = vunpack.c.h.b16 %v342
    %v1073 = vunpack.c.l.b16 %v343
    %v1074 = vunpack.c.h.b16 %v343
    %v1075 = vunpack.c.l.b16 %v344
    %v1076 = vunpack.c.h.b16 %v344
    %v1077 = vunpack.c.l.b16 %v345
    %v1078 = vunpack.c.h.b16 %v345
    %v1079 = vunpack.c.l.b16 %v346
    %v1080 = vunpack.c.h.b16 %v346
    %v1081 = vunpack.c.l.b16 %v347
    %v1082 = vunpack.c.h.b16 %v347
    %v1083 = vunpack.c.l.b16 %v348
    %v1084 = vunpack.c.h.b16 %v348
    %v1085 = vunpack.c.l.b16 %v349
    %v1086 = vpack.c.b16 %v621, %v606
    %v1087 = vpack.c.b16 %v622, %v607
    %v1088 = vpack.c.b16 %v623, %v608
    %v1089 = vpack.c.b16 %v624, %v609
    %v1090 = vpack.c.b16 %v625, %v610
    %v1091 = vpack.c.b16 %v626, %v611
    %v1092 = vpack.c.b16 %v627, %v612
    %v1093 = vpack.c.b16 %v628, %v613
    %v1094 = vpack.c.b16 %v629, %v614
    %v1095 = vpack.c.b16 %v630, %v615
    %v1096 = vpack.c.b16 %v631, %v616
    %v1097 = vpack.c.b16 %v632, %v617
    %v1098 = vpack.c.b16 %v633, %v618
    %v1099 = vpack.c.b16 %v634, %v619
    %v1100 = vpack.c.b16 %v635, %v620
    %v1101 = vpack.c.b16 %v651, %v636
    %v1102 = vpack.c.b16 %v652, %v637
    %v1103 = vpack.c.b16 %v653, %v638
    %v1104 = vpack.c.b16 %v654, %v639
    %v1105 = vpack.c.b16 %v655, %v640
    %v1106 = vpack.c.b16 %v656, %v641
    %v1107 = vpack.c.b16 %v657, %v642
    %v1108 = vpack.c.b16 %v658, %v643
    %v1109 = vpack.c.b16 %v659, %v644
    %v1110 = vpack.c.b16 %v660, %v645
    %v1111 = vpack.c.b16 %v661, %v646
    %v1112 = vpack.c.b16 %v662, %v647
    %v1113 = vpack.c.b16 %v663, %v648
    %v1114 = vpack.c.b16 %v664, %v649
    %v1115 = vpack.c.b16 %v665, %v650
    %v1116 = vpack.c.b16 %v681, %v666
    %v1117 = vpack.c.b16 %v682, %v667
    %v1118 = vpack.c.b16 %v683, %v668
    %v1119 = vpack.c.b16 %v684, %v669
    %v1120 = vpack.c.b16 %v685, %v670
    %v1121 = vpack.c.b16 %v686, %v671
    %v1122 = vpack.c.b16 %v687, %v672
    %v1123 = vpack.c.b16 %v688, %v673
    %v1124 = vpack.c.b16 %v689, %v674
    %v1125 = vpack.c.b16 %v690, %v675
    %v1126 = vpack.c.b16 %v691, %v676
    %v1127 = vpack.c.b16 %v692, %v677
    %v1128 = vpack.c.b16 %v693, %v678
    %v1129 = vpack.c.b16 %v694, %v679
    %v1130 = vpack.c.b16 %v695, %v680
    %v1131 = vpack.c.b16 %v711, %v696
    %v1132 = vpack.c.b16 %v712, %v697
    %v1133 = vpack.c.b16 %v713, %v698
    %v1134 = vpack.c.b16 %v714, %v699
    %v1135 = vpack.c.b16 %v715, %v700
    %v1136 = vpack.c.b16 %v716, %v701
    %v1137 = vpack.c.b16 %v717, %v702
    %v1138 = vpack.c.b16 %v718, %v703
    %v1139 = vpack.c.b16 %v719, %v704
    %v1140 = vpack.c.b16 %v720, %v705
    %v1141 = vpack.c.b16 %v721, %v706
    %v1142 = vpack.c.b16 %v722, %v707
    %v1143 = vpack.c.b16 %v723, %v708
    %v1144 = vpack.c.b16 %v724, %v709
    %v1145 = vpack.c.b16 %v725, %v710
    %v1146 = vpack.c.b16 %v741, %v726
    %v1147 = vpack.c.b16 %v742, %v727
    %v1148 = vpack.c.b16 %v743, %v728
    %v1149 = vpack.c.b16 %v744, %v729
    %v1150 = vpack.c.b16 %v745, %v730
    %v1151 = vpack.c.b16 %v746, %v731
    %v1152 = vpack.c.b16 %v747, %v732
    %v1153 = vpack.c.b16 %v748, %v733
    %v1154 = vpack.c.b16 %v749, %v734
    %v1155 = vpack.c.b16 %v750, %v735
    %v1156 = vpack.c.b16 %v751, %v736
    %v1157 = vpack.c.b16 %v752, %v737
    %v1158 = vpack.c.b16 %v753, %v738
    %v1159 = vpack.c.b16 %v754, %v739
    %v1160 = vpack.c.b16 %v755, %v740
    %v1161 = vpack.c.b16 %v771, %v756
    %v1162 = vpack.c.b16 %v772, %v757
    %v1163 = vpack.c.b16 %v773, %v758
    %v1164 = vpack.c.b16 %v774, %v759
    %v1165 = vpack.c.b16 %v775, %v760
    %v1166 = vpack.c.b16 %v776, %v761
    %v1167 = vpack.c.b16 %v777, %v762
    %v1168 = vpack.c.b16 %v778, %v763
    %v1169 = vpack.c.b16 %v779, %v764
    %v1170 = vpack.c.b16 %v780, %v765
    %v1171 = vpack.c.b16 %v781, %v766
    %v1172 = vpack.c.b16 %v782, %v767
    %v1173 = vpack.c.b16 %v783, %v768
    %v1174 = vpack.c.b16 %v784, %v769
    %v1175 = vpack.c.b16 %v785, %v770
    %v1176 = vpack.c.b16 %v801, %v786
    %v1177 = vpack.c.b16 %v802, %v787
    %v1178 = vpack.c.b16 %v803, %v788
    %v1179 = vpack.c.b16 %v804, %v789
    %v1180 = vpack.c.b16 %v805, %v790
    %v1181 = vpack.c.b16 %v806, %v791
    %v1182 = vpack.c.b16 %v807, %v792
    %v1183 = vpack.c.b16 %v808, %v793
    %v1184 = vpack.c.b16 %v809, %v794
    %v1185 = vpack.c.b16 %v810, %v795
    %v1186 = vpack.c.b16 %v811, %v796
    %v1187 = vpack.c.b16 %v812, %v797
    %v1188 = vpack.c.b16 %v813, %v798
    %v1189 = vpack.c.b16 %v814, %v799
    %v1190 = vpack.c.b16 %v815, %v800
    %v1191 = vpack.c.b16 %v831, %v816
    %v1192 = vpack.c.b16 %v832, %v817
    %v1193 = vpack.c.b16 %v833, %v818
    %v1194 = vpack.c.b16 %v834, %v819
    %v1195 = vpack.c.b16 %v835, %v820
    %v1196 = vpack.c.b16 %v836, %v821
    %v1197 = vpack.c.b16 %v837, %v822
    %v1198 = vpack.c.b16 %v838, %v823
    %v1199 = vpack.c.b16 %v839, %v824
    %v1200 = vpack.c.b16 %v840, %v825
    %v1201 = vpack.c.b16 %v841, %v826
    %v1202 = vpack.c.b16 %v842, %v827
    %v1203 = vpack.c.b16 %v843, %v828
    %v1204 = vpack.c.b16 %v844, %v829
    %v1205 = vpack.c.b16 %v845, %v830
    %v1206 = vpack.c.b16 %v861, %v846
    %v1207 = vpack.c.b16 %v862, %v847
    %v1208 = vpack.c.b16 %v863, %v848
    %v1209 = vpack.c.b16 %v864, %v849
    %v1210 = vpack.c.b16 %v865, %v850
    %v1211 = vpack.c.b16 %v866, %v851
    %v1212 = vpack.c.b16 %v867, %v852
    %v1213 = vpack.c.b16 %v868, %v853
    %v1214 = vpack.c.b16 %v869, %v854
    %v1215 = vpack.c.b16 %v870, %v855
    %v1216 = vpack.c.b16 %v871, %v856
    %v1217 = vpack.c.b16 %v872, %v857
    %v1218 = vpack.c.b16 %v873, %v858
    %v1219 = vpack.c.b16 %v874, %v859
    %v1220 = vpack.c.b16 %v875, %v860
    %v1221 = vpack.c.b16 %v891, %v876
    %v1222 = vpack.c.b16 %v892, %v877
    %v1223 = vpack.c.b16 %v893, %v878
    %v1224 = vpack.c.b16 %v894, %v879
    %v1225 = vpack.c.b16 %v895, %v880
    %v1226 = vpack.c.b16 %v896, %v881
    %v1227 = vpack.c.b16 %v897, %v882
    %v1228 = vpack.c.b16 %v898, %v883
    %v1229 = vpack.c.b16 %v899, %v884
    %v1230 = vpack.c.b16 %v900, %v885
    %v1231 = vpack.c.b16 %v901, %v886
    %v1232 = vpack.c.b16 %v902, %v887
    %v1233 = vpack.c.b16 %v903, %v888
    %v1234 = vpack.c.b16 %v904, %v889
    %v1235 = vpack.c.b16 %v905, %v890
    %v1236 = vpack.c.b16 %v921, %v906
    %v1237 = vpack.c.b16 %v922, %v907
    %v1238 = vpack.c.b16 %v923, %v908
    %v1239 = vpack.c.b16 %v924, %v909
    %v1240 = vpack.c.b16 %v925, %v910
    %v1241 = vpack.c.b16 %v926, %v911
    %v1242 = vpack.c.b16 %v927, %v912
    %v1243 = vpack.c.b16 %v928, %v913
    %v1244 = vpack.c.b16 %v929, %v914
    %v1245 = vpack.c.b16 %v930, %v915
    %v1246 = vpack.c.b16 %v931, %v916
    %v1247 = vpack.c.b16 %v932, %v917
    %v1248 = vpack.c.b16 %v933, %v918
    %v1249 = vpack.c.b16 %v934, %v919
    %v1250 = vpack.c.b16 %v935, %v920
    %v1251 = vpack.c.b16 %v951, %v936
    %v1252 = vpack.c.b16 %v952, %v937
    %v1253 = vpack.c.b16 %v953, %v938
    %v1254 = vpack.c.b16 %v954, %v939
    %v1255 = vpack.c.b16 %v955, %v940
    %v1256 = vpack.c.b16 %v956, %v941
    %v1257 = vpack.c.b16 %v957, %v942
    %v1258 = vpack.c.b16 %v958, %v943
    %v1259 = vpack.c.b16 %v959, %v944
    %v1260 = vpack.c.b16 %v960, %v945
    %v1261 = vpack.c.b16 %v961, %v946
    %v1262 = vpack.c.b16 %v962, %v947
    %v1263 = vpack.c.b16 %v963, %v948
    %v1264 = vpack.c.b16 %v964, %v949
    %v1265 = vpack.c.b16 %v965, %v950
    %v1266 = vpack.c.b16 %v981, %v966
    %v1267 = vpack.c.b16 %v982, %v967
    %v1268 = vpack.c.b16 %v983, %v968
    %v1269 = vpack.c.b16 %v984, %v969
    %v1270 = vpack.c.b16 %v985, %v970
    %v1271 = vpack.c.b16 %v986, %v971
    %v1272 = vpack.c.b16 %v987, %v972
    %v1273 = vpack.c.b16 %v988, %v973
    %v1274 = vpack.c.b16 %v989, %v974
    %v1275 = vpack.c.b16 %v990, %v975
    %v1276 = vpack.c.b16 %v991, %v976
    %v1277 = vpack.c.b16 %v992, %v977
    %v1278 = vpack.c.b16 %v993, %v978
    %v1279 = vpack.c.b16 %v994, %v979
    %v1280 = vpack.c.b16 %v995, %v980
    %v1281 = vpack.c.b16 %v1011, %v996
    %v1282 = vpack.c.b16 %v1012, %v997
    %v1283 = vpack.c.b16 %v1013, %v998
    %v1284 = vpack.c.b16 %v1014, %v999
    %v1285 = vpack.c.b16 %v1015, %v1000
    %v1286 = vpack.c.b16 %v1016, %v1001
    %v1287 = vpack.c.b16 %v1017, %v1002
    %v1288 = vpack.c.b16 %v1018, %v1003
    %v1289 = vpack.c.b16 %v1019, %v1004
    %v1290 = vpack.c.b16 %v1020, %v1005
    %v1291 = vpack.c.b16 %v1021, %v1006
    %v1292 = vpack.c.b16 %v1022, %v1007
    %v1293 = vpack.c.b16 %v1023, %v1008
    %v1294 = vpack.c.b16 %v1024, %v1009
    %v1295 = vpack.c.b16 %v1025, %v1010
    %v1296 = vpack.c.b16 %v1041, %v1026
    %v1297 = vpack.c.b16 %v1042, %v1027
    %v1298 = vpack.c.b16 %v1043, %v1028
    %v1299 = vpack.c.b16 %v1044, %v1029
    %v1300 = vpack.c.b16 %v1045, %v1030
    %v1301 = vpack.c.b16 %v1046, %v1031
    %v1302 = vpack.c.b16 %v1047, %v1032
    %v1303 = vpack.c.b16 %v1048, %v1033
    %v1304 = vpack.c.b16 %v1049, %v1034
    %v1305 = vpack.c.b16 %v1050, %v1035
    %v1306 = vpack.c.b16 %v1051, %v1036
    %v1307 = vpack.c.b16 %v1052, %v1037
    %v1308 = vpack.c.b16 %v1053, %v1038
    %v1309 = vpack.c.b16 %v1054, %v1039
    %v1310 = vpack.c.b16 %v1055, %v1040
    %v1311 = vpack.c.b16 %v1071, %v1056
    %v1312 = vpack.c.b16 %v1072, %v1057
    %v1313 = vpack.c.b16 %v1073, %v1058
    %v1314 = vpack.c.b16 %v1074, %v1059
    %v1315 = vpack.c.b16 %v1075, %v1060
    %v1316 = vpack.c.b16 %v1076, %v1061
    %v1317 = vpack.c.b16 %v1077, %v1062
    %v1318 = vpack.c.b16 %v1078, %v1063
    %v1319 = vpack.c.b16 %v1079, %v1064
    %v1320 = vpack.c.b16 %v1080, %v1065
    %v1321 = vpack.c.b16 %v1081, %v1066
    %v1322 = vpack.c.b16 %v1082, %v1067
    %v1323 = vpack.c.b16 %v1083, %v1068
    %v1324 = vpack.c.b16 %v1084, %v1069
    %v1325 = vpack.c.b16 %v1085, %v1070
    %1566 = vmatprep.subr.bf16.mxu0 %v1087
    %1567 = vmatpush1.bf16.msra.mxu0 %v1086
    %1568 = vmatprep.subr.bf16.mxu0 %v1102
    %1569 = vmatpush1.bf16.msra.mxu0 %v1101
    %1570 = vmatprep.subr.bf16.mxu0 %v1117
    %1571 = vmatpush1.bf16.msra.mxu0 %v1116
    %1572 = vmatprep.subr.bf16.mxu0 %v1132
    %1573 = vmatpush1.bf16.msra.mxu0 %v1131
    %1574 = vmatprep.subr.bf16.mxu0 %v1147
    %1575 = vmatpush1.bf16.msra.mxu0 %v1146
    %1576 = vmatprep.subr.bf16.mxu0 %v1162
    %1577 = vmatpush1.bf16.msra.mxu0 %v1161
    %1578 = vmatprep.subr.bf16.mxu0 %v1177
    %1579 = vmatpush1.bf16.msra.mxu0 %v1176
    %1580 = vmatprep.subr.bf16.mxu0 %v1192
    %1581 = vmatpush1.bf16.msra.mxu0 %v1191
    %1582 = vmatprep.subr.bf16.mxu0 %v1207
    %1583 = vmatpush1.bf16.msra.mxu0 %v1206
    %1584 = vmatprep.subr.bf16.mxu0 %v1222
    %1585 = vmatpush1.bf16.msra.mxu0 %v1221
    %1586 = vmatprep.subr.bf16.mxu0 %v1237
    %1587 = vmatpush1.bf16.msra.mxu0 %v1236
    %1588 = vmatprep.subr.bf16.mxu0 %v1252
    %1589 = vmatpush1.bf16.msra.mxu0 %v1251
    %1590 = vmatprep.subr.bf16.mxu0 %v1267
    %1591 = vmatpush1.bf16.msra.mxu0 %v1266
    %1592 = vmatprep.subr.bf16.mxu0 %v1282
    %1593 = vmatpush1.bf16.msra.mxu0 %v1281
    %1594 = vmatprep.subr.bf16.mxu0 %v1297
    %1595 = vmatpush1.bf16.msra.mxu0 %v1296
    %1596 = vmatprep.subr.bf16.mxu0 %v1312
    %1597 = vmatpush1.bf16.msra.mxu0 %v1311
    %1598 = vmatprep.mubr.bf16.mxu0 %v93
    %1599 = vmatmul.mubr.bf16.gmra.mrb[0].mxu0 %v92
    %v1600 = vpop.f32.mrb[0].mxu0
    %v1601 = vadd.f32 0.0, %v1600
    %v1602 = vpop.f32.mrb[0].mxu0
    %v1603 = vadd.f32 0.0, %v1602
    %v1604 = vpop.f32.mrb[0].mxu0
    %v1605 = vpop.f32.mrb[0].mxu0
    %1606 = vdwg.mxu0
    %1607 = vmatprep.subr.bf16.mxu0 %v1089
    %1608 = vmatpush1.bf16.msra.mxu0 %v1088
    %1609 = vmatprep.subr.bf16.mxu0 %v1104
    %1610 = vmatpush1.bf16.msra.mxu0 %v1103
    %1611 = vmatprep.subr.bf16.mxu0 %v1119
    %1612 = vmatpush1.bf16.msra.mxu0 %v1118
    %1613 = vmatprep.subr.bf16.mxu0 %v1134
    %1614 = vmatpush1.bf16.msra.mxu0 %v1133
    %1615 = vmatprep.subr.bf16.mxu0 %v1149
    %1616 = vmatpush1.bf16.msra.mxu0 %v1148
    %1617 = vmatprep.subr.bf16.mxu0 %v1164
    %1618 = vmatpush1.bf16.msra.mxu0 %v1163
    %1619 = vmatprep.subr.bf16.mxu0 %v1179
    %1620 = vmatpush1.bf16.msra.mxu0 %v1178
    %1621 = vmatprep.subr.bf16.mxu0 %v1194
    %1622 = vmatpush1.bf16.msra.mxu0 %v1193
    %1623 = vmatprep.subr.bf16.mxu0 %v1209
    %1624 = vmatpush1.bf16.msra.mxu0 %v1208
    %1625 = vmatprep.subr.bf16.mxu0 %v1224
    %1626 = vmatpush1.bf16.msra.mxu0 %v1223
    %1627 = vmatprep.subr.bf16.mxu0 %v1239
    %1628 = vmatpush1.bf16.msra.mxu0 %v1238
    %1629 = vmatprep.subr.bf16.mxu0 %v1254
    %1630 = vmatpush1.bf16.msra.mxu0 %v1253
    %1631 = vmatprep.subr.bf16.mxu0 %v1269
    %1632 = vmatpush1.bf16.msra.mxu0 %v1268
    %1633 = vmatprep.subr.bf16.mxu0 %v1284
    %1634 = vmatpush1.bf16.msra.mxu0 %v1283
    %1635 = vmatprep.subr.bf16.mxu0 %v1299
    %1636 = vmatpush1.bf16.msra.mxu0 %v1298
    %1637 = vmatprep.subr.bf16.mxu0 %v1314
    %1638 = vmatpush1.bf16.msra.mxu0 %v1313
    %1639 = vmatprep.mubr.bf16.mxu0 %v93
    %1640 = vmatmul.mubr.bf16.gmra.mrb[0].mxu0 %v92
    %v1641 = vpop.f32.mrb[0].mxu0
    %v1642 = vadd.f32 0.0, %v1641
    %v1643 = vpop.f32.mrb[0].mxu0
    %v1644 = vadd.f32 0.0, %v1643
    %v1645 = vpop.f32.mrb[0].mxu0
    %v1646 = vpop.f32.mrb[0].mxu0
    %1647 = vdwg.mxu0
    %1648 = vmatprep.subr.bf16.mxu0 %v1091
    %1649 = vmatpush1.bf16.msra.mxu0 %v1090
    %1650 = vmatprep.subr.bf16.mxu0 %v1106
    %1651 = vmatpush1.bf16.msra.mxu0 %v1105
    %1652 = vmatprep.subr.bf16.mxu0 %v1121
    %1653 = vmatpush1.bf16.msra.mxu0 %v1120
    %1654 = vmatprep.subr.bf16.mxu0 %v1136
    %1655 = vmatpush1.bf16.msra.mxu0 %v1135
    %1656 = vmatprep.subr.bf16.mxu0 %v1151
    %1657 = vmatpush1.bf16.msra.mxu0 %v1150
    %1658 = vmatprep.subr.bf16.mxu0 %v1166
    %1659 = vmatpush1.bf16.msra.mxu0 %v1165
    %1660 = vmatprep.subr.bf16.mxu0 %v1181
    %1661 = vmatpush1.bf16.msra.mxu0 %v1180
    %1662 = vmatprep.subr.bf16.mxu0 %v1196
    %1663 = vmatpush1.bf16.msra.mxu0 %v1195
    %1664 = vmatprep.subr.bf16.mxu0 %v1211
    %1665 = vmatpush1.bf16.msra.mxu0 %v1210
    %1666 = vmatprep.subr.bf16.mxu0 %v1226
    %1667 = vmatpush1.bf16.msra.mxu0 %v1225
    %1668 = vmatprep.subr.bf16.mxu0 %v1241
    %1669 = vmatpush1.bf16.msra.mxu0 %v1240
    %1670 = vmatprep.subr.bf16.mxu0 %v1256
    %1671 = vmatpush1.bf16.msra.mxu0 %v1255
    %1672 = vmatprep.subr.bf16.mxu0 %v1271
    %1673 = vmatpush1.bf16.msra.mxu0 %v1270
    %1674 = vmatprep.subr.bf16.mxu0 %v1286
    %1675 = vmatpush1.bf16.msra.mxu0 %v1285
    %1676 = vmatprep.subr.bf16.mxu0 %v1301
    %1677 = vmatpush1.bf16.msra.mxu0 %v1300
    %1678 = vmatprep.subr.bf16.mxu0 %v1316
    %1679 = vmatpush1.bf16.msra.mxu0 %v1315
    %1680 = vmatprep.mubr.bf16.mxu0 %v93
    %1681 = vmatmul.mubr.bf16.gmra.mrb[0].mxu0 %v92
    %v1682 = vpop.f32.mrb[0].mxu0
    %v1683 = vadd.f32 0.0, %v1682
    %v1684 = vpop.f32.mrb[0].mxu0
    %v1685 = vadd.f32 0.0, %v1684
    %v1686 = vpop.f32.mrb[0].mxu0
    %v1687 = vpop.f32.mrb[0].mxu0
    %1688 = vdwg.mxu0
    %1689 = vmatprep.subr.bf16.mxu0 %v1093
    %1690 = vmatpush1.bf16.msra.mxu0 %v1092
    %1691 = vmatprep.subr.bf16.mxu0 %v1108
    %1692 = vmatpush1.bf16.msra.mxu0 %v1107
    %1693 = vmatprep.subr.bf16.mxu0 %v1123
    %1694 = vmatpush1.bf16.msra.mxu0 %v1122
    %1695 = vmatprep.subr.bf16.mxu0 %v1138
    %1696 = vmatpush1.bf16.msra.mxu0 %v1137
    %1697 = vmatprep.subr.bf16.mxu0 %v1153
    %1698 = vmatpush1.bf16.msra.mxu0 %v1152
    %1699 = vmatprep.subr.bf16.mxu0 %v1168
    %1700 = vmatpush1.bf16.msra.mxu0 %v1167
    %1701 = vmatprep.subr.bf16.mxu0 %v1183
    %1702 = vmatpush1.bf16.msra.mxu0 %v1182
    %1703 = vmatprep.subr.bf16.mxu0 %v1198
    %1704 = vmatpush1.bf16.msra.mxu0 %v1197
    %1705 = vmatprep.subr.bf16.mxu0 %v1213
    %1706 = vmatpush1.bf16.msra.mxu0 %v1212
    %1707 = vmatprep.subr.bf16.mxu0 %v1228
    %1708 = vmatpush1.bf16.msra.mxu0 %v1227
    %1709 = vmatprep.subr.bf16.mxu0 %v1243
    %1710 = vmatpush1.bf16.msra.mxu0 %v1242
    %1711 = vmatprep.subr.bf16.mxu0 %v1258
    %1712 = vmatpush1.bf16.msra.mxu0 %v1257
    %1713 = vmatprep.subr.bf16.mxu0 %v1273
    %1714 = vmatpush1.bf16.msra.mxu0 %v1272
    %1715 = vmatprep.subr.bf16.mxu0 %v1288
    %1716 = vmatpush1.bf16.msra.mxu0 %v1287
    %1717 = vmatprep.subr.bf16.mxu0 %v1303
    %1718 = vmatpush1.bf16.msra.mxu0 %v1302
    %1719 = vmatprep.subr.bf16.mxu0 %v1318
    %1720 = vmatpush1.bf16.msra.mxu0 %v1317
    %1721 = vmatprep.mubr.bf16.mxu0 %v93
    %1722 = vmatmul.mubr.bf16.gmra.mrb[0].mxu0 %v92
    %v1723 = vpop.f32.mrb[0].mxu0
    %v1724 = vadd.f32 0.0, %v1723
    %v1725 = vpop.f32.mrb[0].mxu0
    %v1726 = vadd.f32 0.0, %v1725
    %v1727 = vpop.f32.mrb[0].mxu0
    %v1728 = vpop.f32.mrb[0].mxu0
    %1729 = vdwg.mxu0
    %1730 = vmatprep.subr.bf16.mxu0 %v1095
    %1731 = vmatpush1.bf16.msra.mxu0 %v1094
    %1732 = vmatprep.subr.bf16.mxu0 %v1110
    %1733 = vmatpush1.bf16.msra.mxu0 %v1109
    %1734 = vmatprep.subr.bf16.mxu0 %v1125
    %1735 = vmatpush1.bf16.msra.mxu0 %v1124
    %1736 = vmatprep.subr.bf16.mxu0 %v1140
    %1737 = vmatpush1.bf16.msra.mxu0 %v1139
    %1738 = vmatprep.subr.bf16.mxu0 %v1155
    %1739 = vmatpush1.bf16.msra.mxu0 %v1154
    %1740 = vmatprep.subr.bf16.mxu0 %v1170
    %1741 = vmatpush1.bf16.msra.mxu0 %v1169
    %1742 = vmatprep.subr.bf16.mxu0 %v1185
    %1743 = vmatpush1.bf16.msra.mxu0 %v1184
    %1744 = vmatprep.subr.bf16.mxu0 %v1200
    %1745 = vmatpush1.bf16.msra.mxu0 %v1199
    %1746 = vmatprep.subr.bf16.mxu0 %v1215
    %1747 = vmatpush1.bf16.msra.mxu0 %v1214
    %1748 = vmatprep.subr.bf16.mxu0 %v1230
    %1749 = vmatpush1.bf16.msra.mxu0 %v1229
    %1750 = vmatprep.subr.bf16.mxu0 %v1245
    %1751 = vmatpush1.bf16.msra.mxu0 %v1244
    %1752 = vmatprep.subr.bf16.mxu0 %v1260
    %1753 = vmatpush1.bf16.msra.mxu0 %v1259
    %1754 = vmatprep.subr.bf16.mxu0 %v1275
    %1755 = vmatpush1.bf16.msra.mxu0 %v1274
    %1756 = vmatprep.subr.bf16.mxu0 %v1290
    %1757 = vmatpush1.bf16.msra.mxu0 %v1289
    %1758 = vmatprep.subr.bf16.mxu0 %v1305
    %1759 = vmatpush1.bf16.msra.mxu0 %v1304
    %1760 = vmatprep.subr.bf16.mxu0 %v1320
    %1761 = vmatpush1.bf16.msra.mxu0 %v1319
    %1762 = vmatprep.mubr.bf16.mxu0 %v93
    %1763 = vmatmul.mubr.bf16.gmra.mrb[0].mxu0 %v92
    %v1764 = vpop.f32.mrb[0].mxu0
    %v1765 = vadd.f32 0.0, %v1764
    %v1766 = vpop.f32.mrb[0].mxu0
    %v1767 = vadd.f32 0.0, %v1766
    %v1768 = vpop.f32.mrb[0].mxu0
    %v1769 = vpop.f32.mrb[0].mxu0
    %1770 = vdwg.mxu0
    %1771 = vmatprep.subr.bf16.mxu0 %v1097
    %1772 = vmatpush1.bf16.msra.mxu0 %v1096
    %1773 = vmatprep.subr.bf16.mxu0 %v1112
    %1774 = vmatpush1.bf16.msra.mxu0 %v1111
    %1775 = vmatprep.subr.bf16.mxu0 %v1127
    %1776 = vmatpush1.bf16.msra.mxu0 %v1126
    %1777 = vmatprep.subr.bf16.mxu0 %v1142
    %1778 = vmatpush1.bf16.msra.mxu0 %v1141
    %1779 = vmatprep.subr.bf16.mxu0 %v1157
    %1780 = vmatpush1.bf16.msra.mxu0 %v1156
    %1781 = vmatprep.subr.bf16.mxu0 %v1172
    %1782 = vmatpush1.bf16.msra.mxu0 %v1171
    %1783 = vmatprep.subr.bf16.mxu0 %v1187
    %1784 = vmatpush1.bf16.msra.mxu0 %v1186
    %1785 = vmatprep.subr.bf16.mxu0 %v1202
    %1786 = vmatpush1.bf16.msra.mxu0 %v1201
    %1787 = vmatprep.subr.bf16.mxu0 %v1217
    %1788 = vmatpush1.bf16.msra.mxu0 %v1216
    %1789 = vmatprep.subr.bf16.mxu0 %v1232
    %1790 = vmatpush1.bf16.msra.mxu0 %v1231
    %1791 = vmatprep.subr.bf16.mxu0 %v1247
    %1792 = vmatpush1.bf16.msra.mxu0 %v1246
    %1793 = vmatprep.subr.bf16.mxu0 %v1262
    %1794 = vmatpush1.bf16.msra.mxu0 %v1261
    %1795 = vmatprep.subr.bf16.mxu0 %v1277
    %1796 = vmatpush1.bf16.msra.mxu0 %v1276
    %1797 = vmatprep.subr.bf16.mxu0 %v1292
    %1798 = vmatpush1.bf16.msra.mxu0 %v1291
    %1799 = vmatprep.subr.bf16.mxu0 %v1307
    %1800 = vmatpush1.bf16.msra.mxu0 %v1306
    %1801 = vmatprep.subr.bf16.mxu0 %v1322
    %1802 = vmatpush1.bf16.msra.mxu0 %v1321
    %1803 = vmatprep.mubr.bf16.mxu0 %v93
    %1804 = vmatmul.mubr.bf16.gmra.mrb[0].mxu0 %v92
    %v1805 = vpop.f32.mrb[0].mxu0
    %v1806 = vadd.f32 0.0, %v1805
    %v1807 = vpop.f32.mrb[0].mxu0
    %v1808 = vadd.f32 0.0, %v1807
    %v1809 = vpop.f32.mrb[0].mxu0
    %v1810 = vpop.f32.mrb[0].mxu0
    %1811 = vdwg.mxu0
    %1812 = vmatprep.subr.bf16.mxu0 %v1099
    %1813 = vmatpush1.bf16.msra.mxu0 %v1098
    %1814 = vmatprep.subr.bf16.mxu0 %v1114
    %1815 = vmatpush1.bf16.msra.mxu0 %v1113
    %1816 = vmatprep.subr.bf16.mxu0 %v1129
    %1817 = vmatpush1.bf16.msra.mxu0 %v1128
    %1818 = vmatprep.subr.bf16.mxu0 %v1144
    %1819 = vmatpush1.bf16.msra.mxu0 %v1143
    %1820 = vmatprep.subr.bf16.mxu0 %v1159
    %1821 = vmatpush1.bf16.msra.mxu0 %v1158
    %1822 = vmatprep.subr.bf16.mxu0 %v1174
    %1823 = vmatpush1.bf16.msra.mxu0 %v1173
    %1824 = vmatprep.subr.bf16.mxu0 %v1189
    %1825 = vmatpush1.bf16.msra.mxu0 %v1188
    %1826 = vmatprep.subr.bf16.mxu0 %v1204
    %1827 = vmatpush1.bf16.msra.mxu0 %v1203
    %1828 = vmatprep.subr.bf16.mxu0 %v1219
    %1829 = vmatpush1.bf16.msra.mxu0 %v1218
    %1830 = vmatprep.subr.bf16.mxu0 %v1234
    %1831 = vmatpush1.bf16.msra.mxu0 %v1233
    %1832 = vmatprep.subr.bf16.mxu0 %v1249
    %1833 = vmatpush1.bf16.msra.mxu0 %v1248
    %1834 = vmatprep.subr.bf16.mxu0 %v1264
    %1835 = vmatpush1.bf16.msra.mxu0 %v1263
    %1836 = vmatprep.subr.bf16.mxu0 %v1279
    %1837 = vmatpush1.bf16.msra.mxu0 %v1278
    %1838 = vmatprep.subr.bf16.mxu0 %v1294
    %1839 = vmatpush1.bf16.msra.mxu0 %v1293
    %1840 = vmatprep.subr.bf16.mxu0 %v1309
    %1841 = vmatpush1.bf16.msra.mxu0 %v1308
    %1842 = vmatprep.subr.bf16.mxu0 %v1324
    %1843 = vmatpush1.bf16.msra.mxu0 %v1323
    %1844 = vmatprep.mubr.bf16.mxu0 %v93
    %1845 = vmatmul.mubr.bf16.gmra.mrb[0].mxu0 %v92
    %v1846 = vpop.f32.mrb[0].mxu0
    %v1847 = vadd.f32 0.0, %v1846
    %v1848 = vpop.f32.mrb[0].mxu0
    %v1849 = vadd.f32 0.0, %v1848
    %v1850 = vpop.f32.mrb[0].mxu0
    %v1851 = vpop.f32.mrb[0].mxu0
    %1852 = vdwg.mxu0
    %1853 = vmatprep.subr.bf16.mxu0 0
    %1854 = vmatpush1.bf16.msra.mxu0 %v1100
    %1855 = vmatprep.subr.bf16.mxu0 0
    %1856 = vmatpush1.bf16.msra.mxu0 %v1115
    %1857 = vmatprep.subr.bf16.mxu0 0
    %1858 = vmatpush1.bf16.msra.mxu0 %v1130
    %1859 = vmatprep.subr.bf16.mxu0 0
    %1860 = vmatpush1.bf16.msra.mxu0 %v1145
    %1861 = vmatprep.subr.bf16.mxu0 0
    %1862 = vmatpush1.bf16.msra.mxu0 %v1160
    %1863 = vmatprep.subr.bf16.mxu0 0
    %1864 = vmatpush1.bf16.msra.mxu0 %v1175
    %1865 = vmatprep.subr.bf16.mxu0 0
    %1866 = vmatpush1.bf16.msra.mxu0 %v1190
    %1867 = vmatprep.subr.bf16.mxu0 0
    %1868 = vmatpush1.bf16.msra.mxu0 %v1205
    %1869 = vmatprep.subr.bf16.mxu0 0
    %1870 = vmatpush1.bf16.msra.mxu0 %v1220
    %1871 = vmatprep.subr.bf16.mxu0 0
    %1872 = vmatpush1.bf16.msra.mxu0 %v1235
    %1873 = vmatprep.subr.bf16.mxu0 0
    %1874 = vmatpush1.bf16.msra.mxu0 %v1250
    %1875 = vmatprep.subr.bf16.mxu0 0
    %1876 = vmatpush1.bf16.msra.mxu0 %v1265
    %1877 = vmatprep.subr.bf16.mxu0 0
    %1878 = vmatpush1.bf16.msra.mxu0 %v1280
    %1879 = vmatprep.subr.bf16.mxu0 0
    %1880 = vmatpush1.bf16.msra.mxu0 %v1295
    %1881 = vmatprep.subr.bf16.mxu0 0
    %1882 = vmatpush1.bf16.msra.mxu0 %v1310
    %1883 = vmatprep.subr.bf16.mxu0 0
    %1884 = vmatpush1.bf16.msra.mxu0 %v1325
    %1885 = vmatprep.mubr.bf16.mxu0 %v93
    %1886 = vmatmul.mubr.bf16.gmra.mrb[0].mxu0 %v92
    %v1887 = vpop.f32.mrb[0].mxu0
    %v1888 = vadd.f32 0.0, %v1887
    %v1889 = vpop.f32.mrb[0].mxu0
    %v1890 = vpop.f32.mrb[0].mxu0
    %v1891 = vpop.f32.mrb[0].mxu0
    %1892 = vdwg.mxu0
    %v1893 = vld [vmem:[%s5] sm:$0xff]
    %v1894 = vld [vmem:[%s5 + $0x8] sm:$0xff]
    %v1895 = vld [vmem:[%s5 + $0x10] sm:$0xff]
    %v1896 = vld [vmem:[%s5 + $0x18] sm:$0xff]
    %v1897 = vld [vmem:[%s5 + $0x20] sm:$0xff]
    %v1898 = vld [vmem:[%s5 + $0x28] sm:$0xff]
    %v1899 = vld [vmem:[%s5 + $0x30] sm:$0xff]
    %v1900 = vld [vmem:[%s5 + $0x38] sm:$0xff]
    %1901 = vmatprep.subr.mxu0 %v1894
    %1902 = vmatpush1.xpose.msra.mxu0 %v1893
    %1903 = vmatprep.subr.mxu0 0.0
    %1904 = vmatpush1.xpose.msra.mxu0 0.0
    %1905 = vmatprep.subr.mxu0 0.0
    %1906 = vmatpush1.xpose.msra.mxu0 0.0
    %1907 = vmatprep.subr.mxu0 0.0
    %1908 = vmatpush1.xpose.msra.mxu0 0.0
    %1909 = vmatprep.subr.mxu0 0.0
    %1910 = vmatpush1.xpose.msra.mxu0 0.0
    %1911 = vmatprep.subr.mxu0 0.0
    %1912 = vmatpush1.xpose.msra.mxu0 0.0
    %1913 = vmatprep.subr.mxu0 0.0
    %1914 = vmatpush1.xpose.msra.mxu0 0.0
    %1915 = vmatprep.subr.mxu0 0.0
    %1916 = vmatpush1.xpose.msra.mxu0 0.0
    %1917 = vmatprep.subr.mxu0 0.0
    %1918 = vmatpush1.xpose.msra.mxu0 0.0
    %1919 = vmatprep.subr.mxu0 0.0
    %1920 = vmatpush1.xpose.msra.mxu0 0.0
    %1921 = vmatprep.subr.mxu0 0.0
    %1922 = vmatpush1.xpose.msra.mxu0 0.0
    %1923 = vmatprep.subr.mxu0 0.0
    %1924 = vmatpush1.xpose.msra.mxu0 0.0
    %1925 = vmatprep.subr.mxu0 0.0
    %1926 = vmatpush1.xpose.msra.mxu0 0.0
    %1927 = vmatprep.subr.mxu0 0.0
    %1928 = vmatpush1.xpose.msra.mxu0 0.0
    %1929 = vmatprep.subr.mxu0 0.0
    %1930 = vmatpush1.xpose.msra.mxu0 0.0
    %1931 = vmatprep.subr.mxu0 0.0
    %1932 = vmatpush1.xpose.msra.mxu0 0.0
    %1933 = vmatprep.subr.mxu0 0.0
    %1934 = vmatpush1.xpose.msra.mxu0 0.0
    %1935 = vmatprep.subr.mxu0 0.0
    %1936 = vmatpush1.xpose.msra.mxu0 0.0
    %1937 = vmatprep.subr.mxu0 0.0
    %1938 = vmatpush1.xpose.msra.mxu0 0.0
    %1939 = vmatprep.subr.mxu0 0.0
    %1940 = vmatpush1.xpose.msra.mxu0 0.0
    %1941 = vmatprep.subr.mxu0 0.0
    %1942 = vmatpush1.xpose.msra.mxu0 0.0
    %1943 = vmatprep.subr.mxu0 0.0
    %1944 = vmatpush1.xpose.msra.mxu0 0.0
    %1945 = vmatprep.subr.mxu0 0.0
    %1946 = vmatpush1.xpose.msra.mxu0 0.0
    %1947 = vmatprep.subr.mxu0 0.0
    %1948 = vmatpush1.xpose.msra.mxu0 0.0
    %1949 = vmatprep.subr.mxu0 0.0
    %1950 = vmatpush1.xpose.msra.mxu0 0.0
    %1951 = vmatprep.subr.mxu0 0.0
    %1952 = vmatpush1.xpose.msra.mxu0 0.0
    %1953 = vmatprep.subr.mxu0 0.0
    %1954 = vmatpush1.xpose.msra.mxu0 0.0
    %1955 = vmatprep.subr.mxu0 0.0
    %1956 = vmatpush1.xpose.msra.mxu0 0.0
    %1957 = vmatprep.subr.mxu0 0.0
    %1958 = vmatpush1.xpose.msra.mxu0 0.0
    %1959 = vmatprep.subr.mxu0 0.0
    %1960 = vmatpush1.xpose.msra.mxu0 0.0
    %1961 = vmatprep.subr.mxu0 0.0
    %1962 = vmatpush1.xpose.msra.mxu0 0.0
    %1963 = vmatprep.subr.mxu0 0.0
    %1964 = vmatpush1.xpose.msra.mxu0 0.0
    %1965 = vmatprep.mubr.f32.mxu0 %v1603
    %1966 = vmatmul.mubr.f32.gmra.mrb[0].mxu0 %v1601
    %v1967 = vpop.f32.mrb[0].mxu0
    %v1968 = vadd.f32 0.0, %v1967
    %v1969 = vpop.f32.mrb[0].mxu0
    %1970 = vdwg.mxu0
    %1971 = vmatprep.subr.mxu0 %v1896
    %1972 = vmatpush1.xpose.msra.mxu0 %v1895
    %1973 = vmatprep.subr.mxu0 0.0
    %1974 = vmatpush1.xpose.msra.mxu0 0.0
    %1975 = vmatprep.subr.mxu0 0.0
    %1976 = vmatpush1.xpose.msra.mxu0 0.0
    %1977 = vmatprep.subr.mxu0 0.0
    %1978 = vmatpush1.xpose.msra.mxu0 0.0
    %1979 = vmatprep.subr.mxu0 0.0
    %1980 = vmatpush1.xpose.msra.mxu0 0.0
    %1981 = vmatprep.subr.mxu0 0.0
    %1982 = vmatpush1.xpose.msra.mxu0 0.0
    %1983 = vmatprep.subr.mxu0 0.0
    %1984 = vmatpush1.xpose.msra.mxu0 0.0
    %1985 = vmatprep.subr.mxu0 0.0
    %1986 = vmatpush1.xpose.msra.mxu0 0.0
    %1987 = vmatprep.subr.mxu0 0.0
    %1988 = vmatpush1.xpose.msra.mxu0 0.0
    %1989 = vmatprep.subr.mxu0 0.0
    %1990 = vmatpush1.xpose.msra.mxu0 0.0
    %1991 = vmatprep.subr.mxu0 0.0
    %1992 = vmatpush1.xpose.msra.mxu0 0.0
    %1993 = vmatprep.subr.mxu0 0.0
    %1994 = vmatpush1.xpose.msra.mxu0 0.0
    %1995 = vmatprep.subr.mxu0 0.0
    %1996 = vmatpush1.xpose.msra.mxu0 0.0
    %1997 = vmatprep.subr.mxu0 0.0
    %1998 = vmatpush1.xpose.msra.mxu0 0.0
    %1999 = vmatprep.subr.mxu0 0.0
    %2000 = vmatpush1.xpose.msra.mxu0 0.0
    %2001 = vmatprep.subr.mxu0 0.0
    %2002 = vmatpush1.xpose.msra.mxu0 0.0
    %2003 = vmatprep.subr.mxu0 0.0
    %2004 = vmatpush1.xpose.msra.mxu0 0.0
    %2005 = vmatprep.subr.mxu0 0.0
    %2006 = vmatpush1.xpose.msra.mxu0 0.0
    %2007 = vmatprep.subr.mxu0 0.0
    %2008 = vmatpush1.xpose.msra.mxu0 0.0
    %2009 = vmatprep.subr.mxu0 0.0
    %2010 = vmatpush1.xpose.msra.mxu0 0.0
    %2011 = vmatprep.subr.mxu0 0.0
    %2012 = vmatpush1.xpose.msra.mxu0 0.0
    %2013 = vmatprep.subr.mxu0 0.0
    %2014 = vmatpush1.xpose.msra.mxu0 0.0
    %2015 = vmatprep.subr.mxu0 0.0
    %2016 = vmatpush1.xpose.msra.mxu0 0.0
    %2017 = vmatprep.subr.mxu0 0.0
    %2018 = vmatpush1.xpose.msra.mxu0 0.0
    %2019 = vmatprep.subr.mxu0 0.0
    %2020 = vmatpush1.xpose.msra.mxu0 0.0
    %2021 = vmatprep.subr.mxu0 0.0
    %2022 = vmatpush1.xpose.msra.mxu0 0.0
    %2023 = vmatprep.subr.mxu0 0.0
    %2024 = vmatpush1.xpose.msra.mxu0 0.0
    %2025 = vmatprep.subr.mxu0 0.0
    %2026 = vmatpush1.xpose.msra.mxu0 0.0
    %2027 = vmatprep.subr.mxu0 0.0
    %2028 = vmatpush1.xpose.msra.mxu0 0.0
    %2029 = vmatprep.subr.mxu0 0.0
    %2030 = vmatpush1.xpose.msra.mxu0 0.0
    %2031 = vmatprep.subr.mxu0 0.0
    %2032 = vmatpush1.xpose.msra.mxu0 0.0
    %2033 = vmatprep.subr.mxu0 0.0
    %2034 = vmatpush1.xpose.msra.mxu0 0.0
    %2035 = vmatprep.mubr.f32.mxu0 %v1644
    %2036 = vmatmul.mubr.f32.gmra.mrb[0].mxu0 %v1642
    %v2037 = vpop.f32.mrb[0].mxu0
    %v2038 = vadd.f32 %v1968, %v2037
    %v2039 = vpop.f32.mrb[0].mxu0
    %2040 = vdwg.mxu0
    %2041 = vmatprep.subr.mxu0 %v1898
    %2042 = vmatpush1.xpose.msra.mxu0 %v1897
    %2043 = vmatprep.subr.mxu0 0.0
    %2044 = vmatpush1.xpose.msra.mxu0 0.0
    %2045 = vmatprep.subr.mxu0 0.0
    %2046 = vmatpush1.xpose.msra.mxu0 0.0
    %2047 = vmatprep.subr.mxu0 0.0
    %2048 = vmatpush1.xpose.msra.mxu0 0.0
    %2049 = vmatprep.subr.mxu0 0.0
    %2050 = vmatpush1.xpose.msra.mxu0 0.0
    %2051 = vmatprep.subr.mxu0 0.0
    %2052 = vmatpush1.xpose.msra.mxu0 0.0
    %2053 = vmatprep.subr.mxu0 0.0
    %2054 = vmatpush1.xpose.msra.mxu0 0.0
    %2055 = vmatprep.subr.mxu0 0.0
    %2056 = vmatpush1.xpose.msra.mxu0 0.0
    %2057 = vmatprep.subr.mxu0 0.0
    %2058 = vmatpush1.xpose.msra.mxu0 0.0
    %2059 = vmatprep.subr.mxu0 0.0
    %2060 = vmatpush1.xpose.msra.mxu0 0.0
    %2061 = vmatprep.subr.mxu0 0.0
    %2062 = vmatpush1.xpose.msra.mxu0 0.0
    %2063 = vmatprep.subr.mxu0 0.0
    %2064 = vmatpush1.xpose.msra.mxu0 0.0
    %2065 = vmatprep.subr.mxu0 0.0
    %2066 = vmatpush1.xpose.msra.mxu0 0.0
    %2067 = vmatprep.subr.mxu0 0.0
    %2068 = vmatpush1.xpose.msra.mxu0 0.0
    %2069 = vmatprep.subr.mxu0 0.0
    %2070 = vmatpush1.xpose.msra.mxu0 0.0
    %2071 = vmatprep.subr.mxu0 0.0
    %2072 = vmatpush1.xpose.msra.mxu0 0.0
    %2073 = vmatprep.subr.mxu0 0.0
    %2074 = vmatpush1.xpose.msra.mxu0 0.0
    %2075 = vmatprep.subr.mxu0 0.0
    %2076 = vmatpush1.xpose.msra.mxu0 0.0
    %2077 = vmatprep.subr.mxu0 0.0
    %2078 = vmatpush1.xpose.msra.mxu0 0.0
    %2079 = vmatprep.subr.mxu0 0.0
    %2080 = vmatpush1.xpose.msra.mxu0 0.0
    %2081 = vmatprep.subr.mxu0 0.0
    %2082 = vmatpush1.xpose.msra.mxu0 0.0
    %2083 = vmatprep.subr.mxu0 0.0
    %2084 = vmatpush1.xpose.msra.mxu0 0.0
    %2085 = vmatprep.subr.mxu0 0.0
    %2086 = vmatpush1.xpose.msra.mxu0 0.0
    %2087 = vmatprep.subr.mxu0 0.0
    %2088 = vmatpush1.xpose.msra.mxu0 0.0
    %2089 = vmatprep.subr.mxu0 0.0
    %2090 = vmatpush1.xpose.msra.mxu0 0.0
    %2091 = vmatprep.subr.mxu0 0.0
    %2092 = vmatpush1.xpose.msra.mxu0 0.0
    %2093 = vmatprep.subr.mxu0 0.0
    %2094 = vmatpush1.xpose.msra.mxu0 0.0
    %2095 = vmatprep.subr.mxu0 0.0
    %2096 = vmatpush1.xpose.msra.mxu0 0.0
    %2097 = vmatprep.subr.mxu0 0.0
    %2098 = vmatpush1.xpose.msra.mxu0 0.0
    %2099 = vmatprep.subr.mxu0 0.0
    %2100 = vmatpush1.xpose.msra.mxu0 0.0
    %2101 = vmatprep.subr.mxu0 0.0
    %2102 = vmatpush1.xpose.msra.mxu0 0.0
    %2103 = vmatprep.subr.mxu0 0.0
    %2104 = vmatpush1.xpose.msra.mxu0 0.0
    %2105 = vmatprep.mubr.f32.mxu0 %v1685
    %2106 = vmatmul.mubr.f32.gmra.mrb[0].mxu0 %v1683
    %v2107 = vpop.f32.mrb[0].mxu0
    %v2108 = vadd.f32 %v2038, %v2107
    %v2109 = vpop.f32.mrb[0].mxu0
    %2110 = vdwg.mxu0
    %2111 = vmatprep.subr.mxu0 %v1900
    %2112 = vmatpush1.xpose.msra.mxu0 %v1899
    %2113 = vmatprep.subr.mxu0 0.0
    %2114 = vmatpush1.xpose.msra.mxu0 0.0
    %2115 = vmatprep.subr.mxu0 0.0
    %2116 = vmatpush1.xpose.msra.mxu0 0.0
    %2117 = vmatprep.subr.mxu0 0.0
    %2118 = vmatpush1.xpose.msra.mxu0 0.0
    %2119 = vmatprep.subr.mxu0 0.0
    %2120 = vmatpush1.xpose.msra.mxu0 0.0
    %2121 = vmatprep.subr.mxu0 0.0
    %2122 = vmatpush1.xpose.msra.mxu0 0.0
    %2123 = vmatprep.subr.mxu0 0.0
    %2124 = vmatpush1.xpose.msra.mxu0 0.0
    %2125 = vmatprep.subr.mxu0 0.0
    %2126 = vmatpush1.xpose.msra.mxu0 0.0
    %2127 = vmatprep.subr.mxu0 0.0
    %2128 = vmatpush1.xpose.msra.mxu0 0.0
    %2129 = vmatprep.subr.mxu0 0.0
    %2130 = vmatpush1.xpose.msra.mxu0 0.0
    %2131 = vmatprep.subr.mxu0 0.0
    %2132 = vmatpush1.xpose.msra.mxu0 0.0
    %2133 = vmatprep.subr.mxu0 0.0
    %2134 = vmatpush1.xpose.msra.mxu0 0.0
    %2135 = vmatprep.subr.mxu0 0.0
    %2136 = vmatpush1.xpose.msra.mxu0 0.0
    %2137 = vmatprep.subr.mxu0 0.0
    %2138 = vmatpush1.xpose.msra.mxu0 0.0
    %2139 = vmatprep.subr.mxu0 0.0
    %2140 = vmatpush1.xpose.msra.mxu0 0.0
    %2141 = vmatprep.subr.mxu0 0.0
    %2142 = vmatpush1.xpose.msra.mxu0 0.0
    %2143 = vmatprep.subr.mxu0 0.0
    %2144 = vmatpush1.xpose.msra.mxu0 0.0
    %2145 = vmatprep.subr.mxu0 0.0
    %2146 = vmatpush1.xpose.msra.mxu0 0.0
    %2147 = vmatprep.subr.mxu0 0.0
    %2148 = vmatpush1.xpose.msra.mxu0 0.0
    %2149 = vmatprep.subr.mxu0 0.0
    %2150 = vmatpush1.xpose.msra.mxu0 0.0
    %2151 = vmatprep.subr.mxu0 0.0
    %2152 = vmatpush1.xpose.msra.mxu0 0.0
    %2153 = vmatprep.subr.mxu0 0.0
    %2154 = vmatpush1.xpose.msra.mxu0 0.0
    %2155 = vmatprep.subr.mxu0 0.0
    %2156 = vmatpush1.xpose.msra.mxu0 0.0
    %2157 = vmatprep.subr.mxu0 0.0
    %2158 = vmatpush1.xpose.msra.mxu0 0.0
    %2159 = vmatprep.subr.mxu0 0.0
    %2160 = vmatpush1.xpose.msra.mxu0 0.0
    %2161 = vmatprep.subr.mxu0 0.0
    %2162 = vmatpush1.xpose.msra.mxu0 0.0
    %2163 = vmatprep.subr.mxu0 0.0
    %2164 = vmatpush1.xpose.msra.mxu0 0.0
    %2165 = vmatprep.subr.mxu0 0.0
    %2166 = vmatpush1.xpose.msra.mxu0 0.0
    %2167 = vmatprep.subr.mxu0 0.0
    %2168 = vmatpush1.xpose.msra.mxu0 0.0
    %2169 = vmatprep.subr.mxu0 0.0
    %2170 = vmatpush1.xpose.msra.mxu0 0.0
    %2171 = vmatprep.subr.mxu0 0.0
    %2172 = vmatpush1.xpose.msra.mxu0 0.0
    %2173 = vmatprep.subr.mxu0 0.0
    %2174 = vmatpush1.xpose.msra.mxu0 0.0
    %2175 = vmatprep.mubr.f32.mxu0 %v1726
    %2176 = vmatmul.mubr.f32.gmra.mrb[0].mxu0 %v1724
    %v2177 = vpop.f32.mrb[0].mxu0
    %v2178 = vadd.f32 %v2108, %v2177
    %v2179 = vpop.f32.mrb[0].mxu0
    %2180 = vdwg.mxu0
    %v2181 = vld [vmem:[%s6] sm:$0xff]
    %v2182 = vld [vmem:[%s6 + $0x8] sm:$0xff]
    %v2183 = vld [vmem:[%s6 + $0x10] sm:$0xff]
    %v2184 = vld [vmem:[%s6 + $0x18] sm:$0xff]
    %v2185 = vld [vmem:[%s6 + $0x20] sm:$0xff]
    %2186 = vmatprep.subr.mxu0 %v2182
    %2187 = vmatpush1.xpose.msra.mxu0 %v2181
    %2188 = vmatprep.subr.mxu0 0.0
    %2189 = vmatpush1.xpose.msra.mxu0 0.0
    %2190 = vmatprep.subr.mxu0 0.0
    %2191 = vmatpush1.xpose.msra.mxu0 0.0
    %2192 = vmatprep.subr.mxu0 0.0
    %2193 = vmatpush1.xpose.msra.mxu0 0.0
    %2194 = vmatprep.subr.mxu0 0.0
    %2195 = vmatpush1.xpose.msra.mxu0 0.0
    %2196 = vmatprep.subr.mxu0 0.0
    %2197 = vmatpush1.xpose.msra.mxu0 0.0
    %2198 = vmatprep.subr.mxu0 0.0
    %2199 = vmatpush1.xpose.msra.mxu0 0.0
    %2200 = vmatprep.subr.mxu0 0.0
    %2201 = vmatpush1.xpose.msra.mxu0 0.0
    %2202 = vmatprep.subr.mxu0 0.0
    %2203 = vmatpush1.xpose.msra.mxu0 0.0
    %2204 = vmatprep.subr.mxu0 0.0
    %2205 = vmatpush1.xpose.msra.mxu0 0.0
    %2206 = vmatprep.subr.mxu0 0.0
    %2207 = vmatpush1.xpose.msra.mxu0 0.0
    %2208 = vmatprep.subr.mxu0 0.0
    %2209 = vmatpush1.xpose.msra.mxu0 0.0
    %2210 = vmatprep.subr.mxu0 0.0
    %2211 = vmatpush1.xpose.msra.mxu0 0.0
    %2212 = vmatprep.subr.mxu0 0.0
    %2213 = vmatpush1.xpose.msra.mxu0 0.0
    %2214 = vmatprep.subr.mxu0 0.0
    %2215 = vmatpush1.xpose.msra.mxu0 0.0
    %2216 = vmatprep.subr.mxu0 0.0
    %2217 = vmatpush1.xpose.msra.mxu0 0.0
    %2218 = vmatprep.subr.mxu0 0.0
    %2219 = vmatpush1.xpose.msra.mxu0 0.0
    %2220 = vmatprep.subr.mxu0 0.0
    %2221 = vmatpush1.xpose.msra.mxu0 0.0
    %2222 = vmatprep.subr.mxu0 0.0
    %2223 = vmatpush1.xpose.msra.mxu0 0.0
    %2224 = vmatprep.subr.mxu0 0.0
    %2225 = vmatpush1.xpose.msra.mxu0 0.0
    %2226 = vmatprep.subr.mxu0 0.0
    %2227 = vmatpush1.xpose.msra.mxu0 0.0
    %2228 = vmatprep.subr.mxu0 0.0
    %2229 = vmatpush1.xpose.msra.mxu0 0.0
    %2230 = vmatprep.subr.mxu0 0.0
    %2231 = vmatpush1.xpose.msra.mxu0 0.0
    %2232 = vmatprep.subr.mxu0 0.0
    %2233 = vmatpush1.xpose.msra.mxu0 0.0
    %2234 = vmatprep.subr.mxu0 0.0
    %2235 = vmatpush1.xpose.msra.mxu0 0.0
    %2236 = vmatprep.subr.mxu0 0.0
    %2237 = vmatpush1.xpose.msra.mxu0 0.0
    %2238 = vmatprep.subr.mxu0 0.0
    %2239 = vmatpush1.xpose.msra.mxu0 0.0
    %2240 = vmatprep.subr.mxu0 0.0
    %2241 = vmatpush1.xpose.msra.mxu0 0.0
    %2242 = vmatprep.subr.mxu0 0.0
    %2243 = vmatpush1.xpose.msra.mxu0 0.0
    %2244 = vmatprep.subr.mxu0 0.0
    %2245 = vmatpush1.xpose.msra.mxu0 0.0
    %2246 = vmatprep.subr.mxu0 0.0
    %2247 = vmatpush1.xpose.msra.mxu0 0.0
    %2248 = vmatprep.subr.mxu0 0.0
    %2249 = vmatpush1.xpose.msra.mxu0 0.0
    %2250 = vmatprep.mubr.f32.mxu0 %v1767
    %2251 = vmatmul.mubr.f32.gmra.mrb[0].mxu0 %v1765
    %v2252 = vpop.f32.mrb[0].mxu0
    %v2253 = vadd.f32 0.0, %v2252
    %v2254 = vpop.f32.mrb[0].mxu0
    %2255 = vdwg.mxu0
    %2256 = vmatprep.subr.mxu0 %v2184
    %2257 = vmatpush1.xpose.msra.mxu0 %v2183
    %2258 = vmatprep.subr.mxu0 0.0
    %2259 = vmatpush1.xpose.msra.mxu0 0.0
    %2260 = vmatprep.subr.mxu0 0.0
    %2261 = vmatpush1.xpose.msra.mxu0 0.0
    %2262 = vmatprep.subr.mxu0 0.0
    %2263 = vmatpush1.xpose.msra.mxu0 0.0
    %2264 = vmatprep.subr.mxu0 0.0
    %2265 = vmatpush1.xpose.msra.mxu0 0.0
    %2266 = vmatprep.subr.mxu0 0.0
    %2267 = vmatpush1.xpose.msra.mxu0 0.0
    %2268 = vmatprep.subr.mxu0 0.0
    %2269 = vmatpush1.xpose.msra.mxu0 0.0
    %2270 = vmatprep.subr.mxu0 0.0
    %2271 = vmatpush1.xpose.msra.mxu0 0.0
    %2272 = vmatprep.subr.mxu0 0.0
    %2273 = vmatpush1.xpose.msra.mxu0 0.0
    %2274 = vmatprep.subr.mxu0 0.0
    %2275 = vmatpush1.xpose.msra.mxu0 0.0
    %2276 = vmatprep.subr.mxu0 0.0
    %2277 = vmatpush1.xpose.msra.mxu0 0.0
    %2278 = vmatprep.subr.mxu0 0.0
    %2279 = vmatpush1.xpose.msra.mxu0 0.0
    %2280 = vmatprep.subr.mxu0 0.0
    %2281 = vmatpush1.xpose.msra.mxu0 0.0
    %2282 = vmatprep.subr.mxu0 0.0
    %2283 = vmatpush1.xpose.msra.mxu0 0.0
    %2284 = vmatprep.subr.mxu0 0.0
    %2285 = vmatpush1.xpose.msra.mxu0 0.0
    %2286 = vmatprep.subr.mxu0 0.0
    %2287 = vmatpush1.xpose.msra.mxu0 0.0
    %2288 = vmatprep.subr.mxu0 0.0
    %2289 = vmatpush1.xpose.msra.mxu0 0.0
    %2290 = vmatprep.subr.mxu0 0.0
    %2291 = vmatpush1.xpose.msra.mxu0 0.0
    %2292 = vmatprep.subr.mxu0 0.0
    %2293 = vmatpush1.xpose.msra.mxu0 0.0
    %2294 = vmatprep.subr.mxu0 0.0
    %2295 = vmatpush1.xpose.msra.mxu0 0.0
    %2296 = vmatprep.subr.mxu0 0.0
    %2297 = vmatpush1.xpose.msra.mxu0 0.0
    %2298 = vmatprep.subr.mxu0 0.0
    %2299 = vmatpush1.xpose.msra.mxu0 0.0
    %2300 = vmatprep.subr.mxu0 0.0
    %2301 = vmatpush1.xpose.msra.mxu0 0.0
    %2302 = vmatprep.subr.mxu0 0.0
    %2303 = vmatpush1.xpose.msra.mxu0 0.0
    %2304 = vmatprep.subr.mxu0 0.0
    %2305 = vmatpush1.xpose.msra.mxu0 0.0
    %2306 = vmatprep.subr.mxu0 0.0
    %2307 = vmatpush1.xpose.msra.mxu0 0.0
    %2308 = vmatprep.subr.mxu0 0.0
    %2309 = vmatpush1.xpose.msra.mxu0 0.0
    %2310 = vmatprep.subr.mxu0 0.0
    %2311 = vmatpush1.xpose.msra.mxu0 0.0
    %2312 = vmatprep.subr.mxu0 0.0
    %2313 = vmatpush1.xpose.msra.mxu0 0.0
    %2314 = vmatprep.subr.mxu0 0.0
    %2315 = vmatpush1.xpose.msra.mxu0 0.0
    %2316 = vmatprep.subr.mxu0 0.0
    %2317 = vmatpush1.xpose.msra.mxu0 0.0
    %2318 = vmatprep.subr.mxu0 0.0
    %2319 = vmatpush1.xpose.msra.mxu0 0.0
    %2320 = vmatprep.mubr.f32.mxu0 %v1808
    %2321 = vmatmul.mubr.f32.gmra.mrb[0].mxu0 %v1806
    %v2322 = vpop.f32.mrb[0].mxu0
    %v2323 = vadd.f32 %v2253, %v2322
    %v2324 = vpop.f32.mrb[0].mxu0
    %2325 = vdwg.mxu0
    %2326 = vmatprep.subr.mxu0 0.0
    %2327 = vmatpush1.xpose.msra.mxu0 %v2185
    %2328 = vmatprep.subr.mxu0 0.0
    %2329 = vmatpush1.xpose.msra.mxu0 0.0
    %2330 = vmatprep.subr.mxu0 0.0
    %2331 = vmatpush1.xpose.msra.mxu0 0.0
    %2332 = vmatprep.subr.mxu0 0.0
    %2333 = vmatpush1.xpose.msra.mxu0 0.0
    %2334 = vmatprep.subr.mxu0 0.0
    %2335 = vmatpush1.xpose.msra.mxu0 0.0
    %2336 = vmatprep.subr.mxu0 0.0
    %2337 = vmatpush1.xpose.msra.mxu0 0.0
    %2338 = vmatprep.subr.mxu0 0.0
    %2339 = vmatpush1.xpose.msra.mxu0 0.0
    %2340 = vmatprep.subr.mxu0 0.0
    %2341 = vmatpush1.xpose.msra.mxu0 0.0
    %2342 = vmatprep.subr.mxu0 0.0
    %2343 = vmatpush1.xpose.msra.mxu0 0.0
    %2344 = vmatprep.subr.mxu0 0.0
    %2345 = vmatpush1.xpose.msra.mxu0 0.0
    %2346 = vmatprep.subr.mxu0 0.0
    %2347 = vmatpush1.xpose.msra.mxu0 0.0
    %2348 = vmatprep.subr.mxu0 0.0
    %2349 = vmatpush1.xpose.msra.mxu0 0.0
    %2350 = vmatprep.subr.mxu0 0.0
    %2351 = vmatpush1.xpose.msra.mxu0 0.0
    %2352 = vmatprep.subr.mxu0 0.0
    %2353 = vmatpush1.xpose.msra.mxu0 0.0
    %2354 = vmatprep.subr.mxu0 0.0
    %2355 = vmatpush1.xpose.msra.mxu0 0.0
    %2356 = vmatprep.subr.mxu0 0.0
    %2357 = vmatpush1.xpose.msra.mxu0 0.0
    %2358 = vmatprep.subr.mxu0 0.0
    %2359 = vmatpush1.xpose.msra.mxu0 0.0
    %2360 = vmatprep.subr.mxu0 0.0
    %2361 = vmatpush1.xpose.msra.mxu0 0.0
    %2362 = vmatprep.subr.mxu0 0.0
    %2363 = vmatpush1.xpose.msra.mxu0 0.0
    %2364 = vmatprep.subr.mxu0 0.0
    %2365 = vmatpush1.xpose.msra.mxu0 0.0
    %2366 = vmatprep.subr.mxu0 0.0
    %2367 = vmatpush1.xpose.msra.mxu0 0.0
    %2368 = vmatprep.subr.mxu0 0.0
    %2369 = vmatpush1.xpose.msra.mxu0 0.0
    %2370 = vmatprep.subr.mxu0 0.0
    %2371 = vmatpush1.xpose.msra.mxu0 0.0
    %2372 = vmatprep.subr.mxu0 0.0
    %2373 = vmatpush1.xpose.msra.mxu0 0.0
    %2374 = vmatprep.subr.mxu0 0.0
    %2375 = vmatpush1.xpose.msra.mxu0 0.0
    %2376 = vmatprep.subr.mxu0 0.0
    %2377 = vmatpush1.xpose.msra.mxu0 0.0
    %2378 = vmatprep.subr.mxu0 0.0
    %2379 = vmatpush1.xpose.msra.mxu0 0.0
    %2380 = vmatprep.subr.mxu0 0.0
    %2381 = vmatpush1.xpose.msra.mxu0 0.0
    %2382 = vmatprep.subr.mxu0 0.0
    %2383 = vmatpush1.xpose.msra.mxu0 0.0
    %2384 = vmatprep.subr.mxu0 0.0
    %2385 = vmatpush1.xpose.msra.mxu0 0.0
    %2386 = vmatprep.subr.mxu0 0.0
    %2387 = vmatpush1.xpose.msra.mxu0 0.0
    %2388 = vmatprep.subr.mxu0 0.0
    %2389 = vmatpush1.xpose.msra.mxu0 0.0
    %2390 = vmatprep.mubr.f32.mxu0 0.0
    %2391 = vmatmul.mubr.f32.gmra.mrb[0].mxu0 %v1847
    %v2392 = vpop.f32.mrb[0].mxu0
    %v2393 = vadd.f32 %v2323, %v2392
    %v2394 = vpop.f32.mrb[0].mxu0
    %2395 = vdwg.mxu0
    %v2396 = vld [vmem:[%s7] sm:$0xff]
    %v2397 = vld [vmem:[%s7 + $0x8] sm:$0xff]
    %v2398 = vld [vmem:[%s7 + $0x10] sm:$0xff]
    %v2399 = vld [vmem:[%s7 + $0x18] sm:$0xff]
    %v2400 = vld [vmem:[%s7 + $0x20] sm:$0xff]
    %v2401 = vld [vmem:[%s7 + $0x28] sm:$0xff]
    %v2402 = vld [vmem:[%s7 + $0x30] sm:$0x3]
    %v2403 = vld [vmem:[%s7 + $0x38] sm:$0x3]
    %2404 = vmatprep.subr.mxu0 %v2397
    %2405 = vmatpush1.xpose.msra.mxu0 %v2396
    %2406 = vmatprep.subr.mxu0 %v2399
    %2407 = vmatpush1.xpose.msra.mxu0 %v2398
    %2408 = vmatprep.subr.mxu0 %v2401
    %2409 = vmatpush1.xpose.msra.mxu0 %v2400
    %2410 = vmatprep.subr.mxu0 %v2403
    %2411 = vmatpush1.xpose.msra.mxu0 %v2402
    %2412 = vmatprep.subr.mxu0 0.0
    %2413 = vmatpush1.xpose.msra.mxu0 0.0
    %2414 = vmatprep.subr.mxu0 0.0
    %2415 = vmatpush1.xpose.msra.mxu0 0.0
    %2416 = vmatprep.subr.mxu0 0.0
    %2417 = vmatpush1.xpose.msra.mxu0 0.0
    %2418 = vmatprep.subr.mxu0 0.0
    %2419 = vmatpush1.xpose.msra.mxu0 0.0
    %2420 = vmatprep.subr.mxu0 0.0
    %2421 = vmatpush1.xpose.msra.mxu0 0.0
    %2422 = vmatprep.subr.mxu0 0.0
    %2423 = vmatpush1.xpose.msra.mxu0 0.0
    %2424 = vmatprep.subr.mxu0 0.0
    %2425 = vmatpush1.xpose.msra.mxu0 0.0
    %2426 = vmatprep.subr.mxu0 0.0
    %2427 = vmatpush1.xpose.msra.mxu0 0.0
    %2428 = vmatprep.subr.mxu0 0.0
    %2429 = vmatpush1.xpose.msra.mxu0 0.0
    %2430 = vmatprep.subr.mxu0 0.0
    %2431 = vmatpush1.xpose.msra.mxu0 0.0
    %2432 = vmatprep.subr.mxu0 0.0
    %2433 = vmatpush1.xpose.msra.mxu0 0.0
    %2434 = vmatprep.subr.mxu0 0.0
    %2435 = vmatpush1.xpose.msra.mxu0 0.0
    %2436 = vmatprep.subr.mxu0 0.0
    %2437 = vmatpush1.xpose.msra.mxu0 0.0
    %2438 = vmatprep.subr.mxu0 0.0
    %2439 = vmatpush1.xpose.msra.mxu0 0.0
    %2440 = vmatprep.subr.mxu0 0.0
    %2441 = vmatpush1.xpose.msra.mxu0 0.0
    %2442 = vmatprep.subr.mxu0 0.0
    %2443 = vmatpush1.xpose.msra.mxu0 0.0
    %2444 = vmatprep.subr.mxu0 0.0
    %2445 = vmatpush1.xpose.msra.mxu0 0.0
    %2446 = vmatprep.subr.mxu0 0.0
    %2447 = vmatpush1.xpose.msra.mxu0 0.0
    %2448 = vmatprep.subr.mxu0 0.0
    %2449 = vmatpush1.xpose.msra.mxu0 0.0
    %2450 = vmatprep.subr.mxu0 0.0
    %2451 = vmatpush1.xpose.msra.mxu0 0.0
    %2452 = vmatprep.subr.mxu0 0.0
    %2453 = vmatpush1.xpose.msra.mxu0 0.0
    %2454 = vmatprep.subr.mxu0 0.0
    %2455 = vmatpush1.xpose.msra.mxu0 0.0
    %2456 = vmatprep.subr.mxu0 0.0
    %2457 = vmatpush1.xpose.msra.mxu0 0.0
    %2458 = vmatprep.subr.mxu0 0.0
    %2459 = vmatpush1.xpose.msra.mxu0 0.0
    %2460 = vmatprep.subr.mxu0 0.0
    %2461 = vmatpush1.xpose.msra.mxu0 0.0
    %2462 = vmatprep.subr.mxu0 0.0
    %2463 = vmatpush1.xpose.msra.mxu0 0.0
    %2464 = vmatprep.subr.mxu0 0.0
    %2465 = vmatpush1.xpose.msra.mxu0 0.0
    %2466 = vmatprep.subr.mxu0 0.0
    %2467 = vmatpush1.xpose.msra.mxu0 0.0
    %2468 = vmatprep.mubr.f32.mxu0 %v1888
    %2469 = vmatmul.mubr.f32.gmra.mrb[0].mxu0 %v1849
    %v2470 = vpop.f32.mrb[0].mxu0
    %v2471 = vadd.f32 0.0, %v2470
    %v2472 = vpop.f32.mrb[0].mxu0
    %2473 = vdwg.mxu0
    %vm2474 = vcmask 1046528
    %v2475 = vsel %vm2474, %v1601, 0.0
    %v2476 = vsel %vm2474, %v1603, 0.0
    %v2477 = vadd.f32 %v2475, %v2476
    %v2478 = vsel %vm2474, %v1642, 0.0
    %v2479 = vadd.f32 %v2477, %v2478
    %v2480 = vsel %vm2474, %v1644, 0.0
    %v2481 = vadd.f32 %v2479, %v2480
    %v2482 = vsel %vm2474, %v1683, 0.0
    %v2483 = vadd.f32 %v2481, %v2482
    %v2484 = vsel %vm2474, %v1685, 0.0
    %v2485 = vadd.f32 %v2483, %v2484
    %v2486 = vsel %vm2474, %v1724, 0.0
    %v2487 = vadd.f32 %v2485, %v2486
    %v2488 = vsel %vm2474, %v1726, 0.0
    %v2489 = vadd.f32 %v2487, %v2488
    %2490 = vadd.xlane.f32.xlu0 %v2489
    %v2491 = vpop.xlane.xlu0 %2490
    %v2492 = vsel %vm2474, %v1765, 0.0
    %v2493 = vsel %vm2474, %v1767, 0.0
    %v2494 = vadd.f32 %v2492, %v2493
    %v2495 = vsel %vm2474, %v1806, 0.0
    %v2496 = vadd.f32 %v2494, %v2495
    %v2497 = vsel %vm2474, %v1808, 0.0
    %v2498 = vadd.f32 %v2496, %v2497
    %v2499 = vsel %vm2474, %v1847, 0.0
    %v2500 = vadd.f32 %v2498, %v2499
    %2501 = vadd.xlane.f32.xlu0 %v2500
    %v2502 = vpop.xlane.xlu0 %2501
    %v2503 = vsel %vm2474, %v1849, 0.0
    %v2504 = vsel %vm2474, %v1888, 0.0
    %v2505 = vadd.f32 %v2503, %v2504
    %2506 = vadd.xlane.f32.xlu0 %v2505
    %v2507 = vpop.xlane.xlu0 %2506
    %v2508 = vrcp.pop %v2491
    %v2509 = vmul.f32 %v2178, %v2508
    %vm2510 = vcmask 63488
    %2511 = vst.msk [vmem:[%s8] sm:$0x7f] %vm2510, %v2509
    %v2512 = vrcp.pop %v2502
    %v2513 = vmul.f32 %v2393, %v2512
    %2515 = vrot.lane.b32.xlu0 %v2513, 8
    %v2516 = vpop.permute.xlu0 %2515
    %vm2518 = vcmask 129088
    %2519 = vst.msk [vmem:[%s8] sm:$0x7f] %vm2518, %v2516
    %v2520 = vrcp.pop %v2507
    %v2521 = vmul.f32 %v2471, %v2520
    %2523 = vrot.lane.b32.xlu0 %v2521, 16
    %v2524 = vpop.permute.xlu0 %2523
    %vm2526 = vcmask 194688
    %2527 = vst.msk [vmem:[%s8] sm:$0x7f] %vm2526, %v2524
    %v2528 = vrcp.pop %v2471
    %2530 = vset.pattern.permute.xlu0 24
    %2531 = vperm.xlu0 %2530, %v2528
    %v2532 = vpop.permute.xlu0 %2531
    %v2534 = vmul.f32 %v2471, %v2532
    %2536 = vrot.lane.b32.xlu0 %v2534, 16
    %v2537 = vpop.permute.xlu0 %2536
    %vm2539 = vcmask 260288
    %2540 = vst.msk [vmem:[%s8] sm:$0x7f] %vm2539, %v2537
    %2541 = vset.pattern.permute.xlu0 25
    %2542 = vperm.xlu0 %2541, %v2528
    %v2543 = vpop.permute.xlu0 %2542
    %v2545 = vmul.f32 %v2471, %v2543
    %2547 = vrot.lane.b32.xlu0 %v2545, 16
    %v2548 = vpop.permute.xlu0 %2547
    %vm2550 = vcmask 325888
    %2551 = vst.msk [vmem:[%s8] sm:$0x7f] %vm2550, %v2548
    // Predicated region
    $region38: #{_isoline_forward.1} parent=1 // pred_check
      _
    $region39: #{_isoline_forward.1} parent=1 // pred_check_branch
      %2553 = sbr.rel (0) target = $region41
    $region40: #{_isoline_forward.1} parent=1 // pred_region
      _
    $region41: #{_isoline_forward.1} parent=1 // pred_fallthru
      _
    // Predicated region
    $region42: #{_isoline_forward.1} parent=1 // pred_check
      _
    $region43: #{_isoline_forward.1} parent=1 // pred_check_branch
      %2555 = sbr.rel (0) target = $region45
    $region44: #{_isoline_forward.1} parent=1 // pred_region
      _
    $region45: #{_isoline_forward.1} parent=1 // pred_fallthru
      _
    %2556 = vsyncpa [#allocation3], 1

</llo_original>
